<compile_context>
chip_gen: v7x
topology: tpu7x:2x2x1
jax: 0.10.0
libtpu: 0.0.40
codegen_flags: <defaults>
</compile_context>

<pallas_src>
import functools

import jax
import jax.numpy as jnp
from jax import lax
from jax.experimental import pallas as pl
from jax.experimental.pallas import tpu as pltpu

# Dimensions implied by the module: label_projection = nn.Linear(768, 1024)
# => CLIP vision hidden = 1024, CLIP text hidden = 768, label dim = 768.
VISION_HIDDEN = 1024
TEXT_HIDDEN = 768
LABEL_DIM = 768
PROJ_DIM = 1024


def _l2_normalize(x):
    # torch.nn.functional.normalize(p=2, dim=-1, eps=1e-12):
    #   x / max(||x||, 1e-12)  ==  x * rsqrt(max(sum(x^2), 1e-24))
    ssq = jnp.sum(x * x, axis=-1, keepdims=True)
    return x * lax.rsqrt(jnp.maximum(ssq, 1e-24))


def similarity_head_kernel(img_ref, stacked_ref, wpT_ref, bp_ref, out_ref, *,
                           num_labels):
    """Fused similarity head of CustomCLIPModel (mode='image_text', similarity=True).

    img_ref     : [B, 1024]       image pooled embeddings (f32)
    stacked_ref : [Lp+B, 768]     label embeddings stacked on text embeddings (f32)
    wpT_ref     : [768, 1024]     label_projection weight, pre-transposed, bf16
    bp_ref      : [1, 1024]       label_projection bias (f32)
    out_ref     : [B, Lp]         combined similarity scores (f32)
    """
    wpT = wpT_ref[...]                                  # bf16 [768, 1024]
    stacked = stacked_ref[...].astype(jnp.bfloat16)     # bf16 [Lp+B, 768]

    # One projection matmul for labels AND text (single RHS push), f32 accum.
    proj = jnp.dot(stacked, wpT, preferred_element_type=jnp.float32) + bp_ref[...]
    proj_labels = proj[:num_labels]                     # [Lp, 1024] f32 (8-aligned)
    proj_text = proj[num_labels:]                       # [B, 1024]  f32

    # F.normalize(p=2, dim=-1) via rsqrt (EUP slot).
    img_n = _l2_normalize(img_ref[...])
    txt_n = _l2_normalize(proj_text)

    # sim_img + sim_txt == (img_n + txt_n) @ proj_labels.T  (linearity of matmul):
    # one MXU pass instead of two.  Contract feature axes via dot_general
    # (no explicit transpose in source; Mosaic handles the NT orientation).
    fused = img_n + txt_n                               # [B, 1024]
    dims = (((1,), (1,)), ((), ()))
    sim = lax.dot_general(fused, proj_labels, dims,
                          preferred_element_type=jnp.float32)  # [B, Lp]

    # Scale on the (small) output tile rather than the 1024-wide fused tile.
    out_ref[...] = sim * 0.5


def prepare_label_projection(wp):
    """Parameter-load-time prep (run ONCE, not per forward call):
    transpose to (in, out) MXU orientation and cast to bf16 in HBM."""
    return jnp.asarray(wp.T, dtype=jnp.bfloat16)        # [768, 1024] bf16


def clip_similarity_head(image_embeds, text_embeds, label_embeddings, wpT_bf16, bp):
    """Launches the Pallas kernel.  `wpT_bf16` comes from prepare_label_projection."""
    B = image_embeds.shape[0]
    L = label_embeddings.shape[0]

    # Pad L up to a sublane multiple so the in-kernel split of the stacked
    # projection is tile-aligned (no VMEM re-layout copies).  No-op when L%8==0.
    L_pad = ((L + 7) // 8) * 8
    if L_pad != L:
        labels = jnp.pad(label_embeddings, ((0, L_pad - L), (0, 0)))
    else:
        labels = label_embeddings

    # Tiny per-call glue: stack [Lp,768] labels with [B,768] text embeddings so
    # the kernel projects both with a single MXU pass over the weight.
    proj_lhs = jnp.concatenate([labels, text_embeds], axis=0)  # [Lp+B, 768]
    bp2 = bp.reshape(1, PROJ_DIM).astype(jnp.float32)

    kernel = functools.partial(similarity_head_kernel, num_labels=L_pad)

    flops = 2 * (L_pad + B) * LABEL_DIM * PROJ_DIM + 2 * B * PROJ_DIM * L_pad
    bytes_accessed = (image_embeds.size * 4 + proj_lhs.size * 4
                      + wpT_bf16.size * 2 + bp2.size * 4 + B * L_pad * 4)

    vmem_spec = pl.BlockSpec(memory_space=pltpu.MemorySpace.VMEM)

    # grid=() : everything is resident in VMEM, fetched exactly once
    # (no double-buffering of the 1.5 MiB bf16 weight).
    out = pl.pallas_call(
        kernel,
        out_shape=jax.ShapeDtypeStruct((B, L_pad), jnp.float32),
        in_specs=[vmem_spec, vmem_spec, vmem_spec, vmem_spec],
        out_specs=vmem_spec,
        cost_estimate=pl.CostEstimate(
            flops=flops,
            transcendentals=2 * B,
            bytes_accessed=bytes_accessed,
        ),
    )(image_embeds, proj_lhs, wpT_bf16, bp2)

    return out[:, :L] if L_pad != L else out


# ---------------------------------------------------------------------------
# Deterministic stand-in CLIP encoders (plain JAX glue).
# TODO(synk): these replace clip_model.vision_model / text_model pooler outputs.
# ---------------------------------------------------------------------------
def vision_pooler_stub(pixel_values, wv):
    # pixel_values: NCHW [B, 3, 16, 16] -> flatten (3*16*16 = 768) -> [B, 1024]
    B = pixel_values.shape[0]
    flat = pixel_values.reshape(B, -1)
    return jnp.tanh(flat @ wv)


def text_pooler_stub(input_ids, attention_mask, emb_table):
    # input_ids: [B, S] int32, attention_mask: [B, S] -> masked mean -> [B, 768]
    tok = emb_table[input_ids]                      # [B, S, 768]
    mask = attention_mask[..., None].astype(jnp.float32)
    pooled = jnp.sum(tok * mask, axis=1) / jnp.maximum(jnp.sum(mask, axis=1), 1.0)
    return pooled


# ---------------------------------------------------------------------------
# Pure-JAX f32 reference of the module's similarity branch (correctness check).
# ---------------------------------------------------------------------------
def reference_head(image_embeds, text_embeds, label_embeddings, wp, bp):
    def norm(x):
        n = jnp.sqrt(jnp.sum(x * x, axis=-1, keepdims=True))
        return x / jnp.maximum(n, 1e-12)
    proj_labels = label_embeddings @ wp.T + bp
    proj_text = text_embeds @ wp.T + bp
    sim_img = norm(image_embeds) @ proj_labels.T
    sim_txt = norm(proj_text) @ proj_labels.T
    return (sim_img + sim_txt) / 2.0


if __name__ == "__main__":
    key = jax.random.PRNGKey(0)
    kpix, kids, kemb, klbl, kwp, kbp, kwv = jax.random.split(key, 7)

    B = 2            # batch
    S = 8            # text sequence length
    L = 16           # num label embeddings
    VOCAB = 32

    # Raw inputs matching the PyTorch forward signature.
    pixel_values = jax.random.normal(kpix, (B, 3, 16, 16), dtype=jnp.float32)  # NCHW
    input_ids = jax.random.randint(kids, (B, S), 0, VOCAB, dtype=jnp.int32)
    attention_mask = jnp.ones((B, S), dtype=jnp.int32)

    # Deterministic synthetic parameters (shapes from the module's __init__).
    label_embeddings = jax.random.normal(klbl, (L, LABEL_DIM), dtype=jnp.float32) * 0.1
    wp = jax.random.normal(kwp, (PROJ_DIM, LABEL_DIM), dtype=jnp.float32) * 0.02  # Linear(768,1024).weight
    bp = jax.random.normal(kbp, (PROJ_DIM,), dtype=jnp.float32) * 0.02            # Linear(768,1024).bias

    # Stand-in encoder params.
    wv = jax.random.normal(kwv, (3 * 16 * 16, VISION_HIDDEN), dtype=jnp.float32) * 0.02
    emb_table = jax.random.normal(kemb, (VOCAB, TEXT_HIDDEN), dtype=jnp.float32) * 0.1

    # Parameter-load-time prep (done once, outside the per-call path).
    wpT_bf16 = prepare_label_projection(wp)

    # "CLIP" pooled embeddings (glue stand-ins).
    image_embeds = vision_pooler_stub(pixel_values, wv)                   # [B, 1024]
    text_embeds = text_pooler_stub(input_ids, attention_mask, emb_table)  # [B, 768]

    # Pallas kernel (hot path of CustomCLIPModel.forward, similarity branch).
    out = clip_similarity_head(image_embeds, text_embeds, label_embeddings,
                               wpT_bf16, bp)
    out = jax.block_until_ready(out)

    ref = reference_head(image_embeds, text_embeds, label_embeddings, wp, bp)
    assert out.shape == (B, L), out.shape
    # bf16 weight/LHS for the projection matmul -> slightly looser tolerance
    # than the pure-f32 reference.
    assert jnp.allclose(out, ref, atol=5e-3, rtol=5e-3), float(jnp.max(jnp.abs(out - ref)))

    print("KERNEL_OK")
</pallas_src>

<mosaic_0001>
module attributes {stable_mosaic.version = 11 : i64} {
  func.func @similarity_head_kernel(%arg0: memref<2x1024xf32, #tpu.memory_space<vmem>>, %arg1: memref<18x768xf32, #tpu.memory_space<vmem>>, %arg2: memref<768x1024xbf16, #tpu.memory_space<vmem>>, %arg3: memref<1x1024xf32, #tpu.memory_space<vmem>>, %arg4: memref<2x16xf32, #tpu.memory_space<vmem>>) attributes {dimension_semantics = [], scalar_prefetch = 0 : i64, scratch_operands = 0 : i64, tpu.core_type = #tpu.core_type<tc>} {
    %c0 = arith.constant 0 : index
    %c0_0 = arith.constant 0 : index
    %0 = vector.load %arg2[%c0, %c0_0] : memref<768x1024xbf16, #tpu.memory_space<vmem>>, vector<768x1024xbf16>
    %c0_1 = arith.constant 0 : index
    %c0_2 = arith.constant 0 : index
    %1 = vector.load %arg1[%c0_1, %c0_2] : memref<18x768xf32, #tpu.memory_space<vmem>>, vector<18x768xf32>
    %2 = arith.truncf %1 : vector<18x768xf32> to vector<18x768xbf16>
    %cst = arith.constant dense<0.000000e+00> : vector<18x1024xf32>
    %3 = tpu.matmul %2, %0, %cst {dimension_numbers = #tpu.dot_dimension_numbers<[1], [0], [0], [1], [0, 0, 1, 1], [], []>} : vector<18x768xbf16>, vector<768x1024xbf16>, vector<18x1024xf32> -> vector<18x1024xf32>
    %c0_3 = arith.constant 0 : index
    %c0_4 = arith.constant 0 : index
    %4 = vector.load %arg3[%c0_3, %c0_4] : memref<1x1024xf32, #tpu.memory_space<vmem>>, vector<1x1024xf32>
    %5 = vector.broadcast %4 : vector<1x1024xf32> to vector<18x1024xf32>
    %6 = arith.addf %3, %5 : vector<18x1024xf32>
    %7 = vector.extract_strided_slice %6 {offsets = [0, 0], sizes = [16, 1024], strides = [1, 1]} : vector<18x1024xf32> to vector<16x1024xf32>
    %8 = vector.extract_strided_slice %6 {offsets = [16, 0], sizes = [2, 1024], strides = [1, 1]} : vector<18x1024xf32> to vector<2x1024xf32>
    %c0_5 = arith.constant 0 : index
    %c0_6 = arith.constant 0 : index
    %9 = vector.load %arg0[%c0_5, %c0_6] : memref<2x1024xf32, #tpu.memory_space<vmem>>, vector<2x1024xf32>
    %10 = arith.mulf %9, %9 : vector<2x1024xf32>
    %cst_7 = arith.constant dense<0.000000e+00> : vector<2xf32>
    %11 = vector.multi_reduction <add>, %10, %cst_7 [1] : vector<2x1024xf32> to vector<2xf32>
    %12 = vector.shape_cast %11 : vector<2xf32> to vector<2x1xf32>
    %cst_8 = arith.constant 1.000000e-24 : f32
    %13 = vector.broadcast %cst_8 : f32 to vector<2x1xf32>
    %14 = arith.maximumf %12, %13 : vector<2x1xf32>
    %15 = math.rsqrt %14 : vector<2x1xf32>
    %16 = vector.broadcast %15 : vector<2x1xf32> to vector<2x1024xf32>
    %17 = arith.mulf %9, %16 : vector<2x1024xf32>
    %18 = arith.mulf %8, %8 : vector<2x1024xf32>
    %cst_9 = arith.constant dense<0.000000e+00> : vector<2xf32>
    %19 = vector.multi_reduction <add>, %18, %cst_9 [1] : vector<2x1024xf32> to vector<2xf32>
    %20 = vector.shape_cast %19 : vector<2xf32> to vector<2x1xf32>
    %cst_10 = arith.constant 1.000000e-24 : f32
    %21 = vector.broadcast %cst_10 : f32 to vector<2x1xf32>
    %22 = arith.maximumf %20, %21 : vector<2x1xf32>
    %23 = math.rsqrt %22 : vector<2x1xf32>
    %24 = vector.broadcast %23 : vector<2x1xf32> to vector<2x1024xf32>
    %25 = arith.mulf %8, %24 : vector<2x1024xf32>
    %26 = arith.addf %17, %25 : vector<2x1024xf32>
    %cst_11 = arith.constant dense<0.000000e+00> : vector<2x16xf32>
    %27 = tpu.matmul %26, %7, %cst_11 {dimension_numbers = #tpu.dot_dimension_numbers<[1], [1], [0], [0], [0, 0, 1, 0], [], []>} : vector<2x1024xf32>, vector<16x1024xf32>, vector<2x16xf32> -> vector<2x16xf32>
    %cst_12 = arith.constant 5.000000e-01 : f32
    %28 = vector.broadcast %cst_12 : f32 to vector<2x16xf32>
    %29 = arith.mulf %27, %28 : vector<2x16xf32>
    %c0_13 = arith.constant 0 : index
    %c0_14 = arith.constant 0 : index
    %30 = vector.load %arg4[%c0_13, %c0_14] : memref<2x16xf32, #tpu.memory_space<vmem>>, vector<2x16xf32>
    tpu.vector_store %arg4[%c0_13, %c0_14], %29 {strides = array<i32>} : memref<2x16xf32, #tpu.memory_space<vmem>>, vector<2x16xf32>,
    return
  }
}

</mosaic_0001>

<llo_original>
// kernel: tpu_custom_call.1
$region0: #{tpu_custom_call.1}
  #allocation0 [shape = 'u32[]', space=smem, size = 0x4, offset = 0x4, fixed_abs, tag = 'smem constant byte address 0x4 - core index']
  #allocation1 [shape = 'u32[144,128]{1,0:T(1,128)}', space=vmem, size = 0x12000, scoped, tag = 'internal scratch']
  %s0 = inlined_call_operand.hbm [shape: f32[2,1024], index: 0, kind: input, shape index: {}]
  %s1 = inlined_call_operand.hbm [shape: f32[18,768], index: 1, kind: input, shape index: {}]
  %s2 = inlined_call_operand.hbm [shape: bf16[768,1024], index: 2, kind: input, shape index: {}]
  %s3 = inlined_call_operand.hbm [shape: f32[1,1024], index: 3, kind: input, shape index: {}]
  %s4 = inlined_call_operand.hbm [shape: f32[2,16], index: 4, kind: output, shape index: {}]
  %s5 = sld [smem:[#allocation0]]
  $region42: #{tpu_custom_call.1} parent=0
    _
  %s7 = ssub.s32 1, %s5
  %s8 = scalar_select 0, %s7, %s5
  $region1: #{tpu_custom_call.1} parent=0
    #allocation2 [shape = 'u8[8192]{0}', space=vmem, size = 0x2000, scoped, tag = 'input window, operand 0, single buffered']
    #allocation3 [shape = 's32[1]{0}', space=sflag, size = 0x4, scoped, tag = 'scoped memory for tpu_custom_call.1']
    #allocation4 [shape = 's32[1]{0}', space=sflag, size = 0x4, scoped, tag = 'scoped memory for tpu_custom_call.1']
    #allocation5 [shape = 'u8[73728]{0}', space=vmem, size = 0x12000, scoped, tag = 'input window, operand 1, single buffered']
    #allocation6 [shape = 's32[1]{0}', space=sflag, size = 0x4, scoped, tag = 'scoped memory for tpu_custom_call.1']
    #allocation7 [shape = 'u8[1572864]{0}', space=vmem, size = 0x180000, scoped, tag = 'input window, operand 2, single buffered']
    #allocation8 [shape = 'u8[4096]{0}', space=vmem, size = 0x1000, scoped, tag = 'input window, operand 3, single buffered']
    #allocation9 [shape = 's32[1]{0}', space=sflag, size = 0x4, scoped, tag = 'scoped memory for tpu_custom_call.1']
    #allocation10 [shape = 'u8[1024]{0}', space=vmem, size = 0x400, scoped, tag = 'output window, operand 0, single buffered']
    %9 = vsyncpa [#allocation3], 0
    %10 = vsyncpa [#allocation6], 0
    %11 = vsyncpa [#allocation9], 0
    %12 = vsyncpa [#allocation4], 0
    // Predicated region
    $region2: #{tpu_custom_call.1} parent=1 // pred_check
      _
    $region3: #{tpu_custom_call.1} parent=1 // pred_check_branch
      %14 = sbr.rel (0) target = $region5
    $region4: #{tpu_custom_call.1} parent=1 // pred_region
      %s16 = ssub.s32 256, 256
      %17 = vsyncadd [#allocation3], %s16
      %s19 = sshll.u32 [#allocation2], 4
      %s20 = int_to_ptr.vmem [resolvable:$true] %s19
      %22 = dma.hbm_to_vmem [thread:$0]  %s0, 256, %s20, [#allocation3]
    $region5: #{tpu_custom_call.1} parent=1 // pred_fallthru
      _
    // Predicated region
    $region6: #{tpu_custom_call.1} parent=1 // pred_check
      _
    $region7: #{tpu_custom_call.1} parent=1 // pred_check_branch
      %24 = sbr.rel (0) target = $region9
    $region8: #{tpu_custom_call.1} parent=1 // pred_region
      %s26 = ssub.s32 2304, 2304
      %27 = vsyncadd [#allocation6], %s26
      %s28 = sshll.u32 [#allocation5], 4
      %s29 = int_to_ptr.vmem [resolvable:$true] %s28
      %34 = dma.hbm_to_vmem [thread:$0]  %s1, 2304, %s29, [#allocation6], 768, 768, 48
    $region9: #{tpu_custom_call.1} parent=1 // pred_fallthru
      _
    // Predicated region
    $region10: #{tpu_custom_call.1} parent=1 // pred_check
      _
    $region11: #{tpu_custom_call.1} parent=1 // pred_check_branch
      %36 = sbr.rel (0) target = $region13
    $region12: #{tpu_custom_call.1} parent=1 // pred_region
      %s38 = ssub.s32 49152, 49152
      %39 = vsyncadd [#allocation6], %s38
      %s40 = sshll.u32 [#allocation7], 4
      %s41 = int_to_ptr.vmem [resolvable:$true] %s40
      %46 = dma.hbm_to_vmem [thread:$0]  %s2, 49152, %s41, [#allocation6], 512, 512, 32
    $region13: #{tpu_custom_call.1} parent=1 // pred_fallthru
      _
    // Predicated region
    $region14: #{tpu_custom_call.1} parent=1 // pred_check
      _
    $region15: #{tpu_custom_call.1} parent=1 // pred_check_branch
      %48 = sbr.rel (0) target = $region17
    $region16: #{tpu_custom_call.1} parent=1 // pred_region
      %s50 = ssub.s32 128, 128
      %51 = vsyncadd [#allocation9], %s50
      %s53 = sshll.u32 [#allocation8], 4
      %s54 = int_to_ptr.vmem [resolvable:$true] %s53
      %56 = dma.hbm_to_vmem [thread:$0]  %s3, 128, %s54, [#allocation9]
    $region17: #{tpu_custom_call.1} parent=1 // pred_fallthru
      _
    // Predicated region
    $region18: #{tpu_custom_call.1} parent=1 // pred_check
      _
    $region19: #{tpu_custom_call.1} parent=1 // pred_check_branch
      %58 = sbr.rel (0) target = $region21
    $region20: #{tpu_custom_call.1} parent=1 // pred_region
      %59 = dma.done [#allocation3], 256
    $region21: #{tpu_custom_call.1} parent=1 // pred_fallthru
      _
    // Predicated region
    $region22: #{tpu_custom_call.1} parent=1 // pred_check
      _
    $region23: #{tpu_custom_call.1} parent=1 // pred_check_branch
      %61 = sbr.rel (0) target = $region25
    $region24: #{tpu_custom_call.1} parent=1 // pred_region
      %62 = dma.done [#allocation6], 2304
    $region25: #{tpu_custom_call.1} parent=1 // pred_fallthru
      _
    // Predicated region
    $region26: #{tpu_custom_call.1} parent=1 // pred_check
      _
    $region27: #{tpu_custom_call.1} parent=1 // pred_check_branch
      %64 = sbr.rel (0) target = $region29
    $region28: #{tpu_custom_call.1} parent=1 // pred_region
      %65 = dma.done [#allocation6], 49152
    $region29: #{tpu_custom_call.1} parent=1 // pred_fallthru
      _
    // Predicated region
    $region30: #{tpu_custom_call.1} parent=1 // pred_check
      _
    $region31: #{tpu_custom_call.1} parent=1 // pred_check_branch
      %67 = sbr.rel (0) target = $region33
    $region32: #{tpu_custom_call.1} parent=1 // pred_region
      %68 = dma.done [#allocation9], 128
    $region33: #{tpu_custom_call.1} parent=1 // pred_fallthru
      _
    %v69 = vld [vmem:[#allocation7] sm:$0xff]
    %v70 = vld [vmem:[#allocation7 + $0x8] sm:$0xff]
    %v71 = vld [vmem:[#allocation7 + $0x10] sm:$0xff]
    %v72 = vld [vmem:[#allocation7 + $0x18] sm:$0xff]
    %v73 = vld [vmem:[#allocation7 + $0x20] sm:$0xff]
    %v74 = vld [vmem:[#allocation7 + $0x28] sm:$0xff]
    %v75 = vld [vmem:[#allocation7 + $0x30] sm:$0xff]
    %v76 = vld [vmem:[#allocation7 + $0x38] sm:$0xff]
    %v77 = vld [vmem:[#allocation7 + $0x40] sm:$0xff]
    %v78 = vld [vmem:[#allocation7 + $0x48] sm:$0xff]
    %v79 = vld [vmem:[#allocation7 + $0x50] sm:$0xff]
    %v80 = vld [vmem:[#allocation7 + $0x58] sm:$0xff]
    %v81 = vld [vmem:[#allocation7 + $0x60] sm:$0xff]
    %v82 = vld [vmem:[#allocation7 + $0x68] sm:$0xff]
    %v83 = vld [vmem:[#allocation7 + $0x70] sm:$0xff]
    %v84 = vld [vmem:[#allocation7 + $0x78] sm:$0xff]
    %v85 = vld [vmem:[#allocation7 + $0x80] sm:$0xff]
    %v86 = vld [vmem:[#allocation7 + $0x88] sm:$0xff]
    %v87 = vld [vmem:[#allocation7 + $0x90] sm:$0xff]
    %v88 = vld [vmem:[#allocation7 + $0x98] sm:$0xff]
    %v89 = vld [vmem:[#allocation7 + $0xa0] sm:$0xff]
    %v90 = vld [vmem:[#allocation7 + $0xa8] sm:$0xff]
    %v91 = vld [vmem:[#allocation7 + $0xb0] sm:$0xff]
    %v92 = vld [vmem:[#allocation7 + $0xb8] sm:$0xff]
    %v93 = vld [vmem:[#allocation7 + $0xc0] sm:$0xff]
    %v94 = vld [vmem:[#allocation7 + $0xc8] sm:$0xff]
    %v95 = vld [vmem:[#allocation7 + $0xd0] sm:$0xff]
    %v96 = vld [vmem:[#allocation7 + $0xd8] sm:$0xff]
    %v97 = vld [vmem:[#allocation7 + $0xe0] sm:$0xff]
    %v98 = vld [vmem:[#allocation7 + $0xe8] sm:$0xff]
    %v99 = vld [vmem:[#allocation7 + $0xf0] sm:$0xff]
    %v100 = vld [vmem:[#allocation7 + $0xf8] sm:$0xff]
    %v101 = vld [vmem:[#allocation7 + $0x100] sm:$0xff]
    %v102 = vld [vmem:[#allocation7 + $0x108] sm:$0xff]
    %v103 = vld [vmem:[#allocation7 + $0x110] sm:$0xff]
    %v104 = vld [vmem:[#allocation7 + $0x118] sm:$0xff]
    %v105 = vld [vmem:[#allocation7 + $0x120] sm:$0xff]
    %v106 = vld [vmem:[#allocation7 + $0x128] sm:$0xff]
    %v107 = vld [vmem:[#allocation7 + $0x130] sm:$0xff]
    %v108 = vld [vmem:[#allocation7 + $0x138] sm:$0xff]
    %v109 = vld [vmem:[#allocation7 + $0x140] sm:$0xff]
    %v110 = vld [vmem:[#allocation7 + $0x148] sm:$0xff]
    %v111 = vld [vmem:[#allocation7 + $0x150] sm:$0xff]
    %v112 = vld [vmem:[#allocation7 + $0x158] sm:$0xff]
    %v113 = vld [vmem:[#allocation7 + $0x160] sm:$0xff]
    %v114 = vld [vmem:[#allocation7 + $0x168] sm:$0xff]
    %v115 = vld [vmem:[#allocation7 + $0x170] sm:$0xff]
    %v116 = vld [vmem:[#allocation7 + $0x178] sm:$0xff]
    %v117 = vld [vmem:[#allocation7 + $0x180] sm:$0xff]
    %v118 = vld [vmem:[#allocation7 + $0x188] sm:$0xff]
    %v119 = vld [vmem:[#allocation7 + $0x190] sm:$0xff]
    %v120 = vld [vmem:[#allocation7 + $0x198] sm:$0xff]
    %v121 = vld [vmem:[#allocation7 + $0x1a0] sm:$0xff]
    %v122 = vld [vmem:[#allocation7 + $0x1a8] sm:$0xff]
    %v123 = vld [vmem:[#allocation7 + $0x1b0] sm:$0xff]
    %v124 = vld [vmem:[#allocation7 + $0x1b8] sm:$0xff]
    %v125 = vld [vmem:[#allocation7 + $0x1c0] sm:$0xff]
    %v126 = vld [vmem:[#allocation7 + $0x1c8] sm:$0xff]
    %v127 = vld [vmem:[#allocation7 + $0x1d0] sm:$0xff]
    %v128 = vld [vmem:[#allocation7 + $0x1d8] sm:$0xff]
    %v129 = vld [vmem:[#allocation7 + $0x1e0] sm:$0xff]
    %v130 = vld [vmem:[#allocation7 + $0x1e8] sm:$0xff]
    %v131 = vld [vmem:[#allocation7 + $0x1f0] sm:$0xff]
    %v132 = vld [vmem:[#allocation7 + $0x1f8] sm:$0xff]
    %v133 = vld [vmem:[#allocation7 + $0x200] sm:$0xff]
    %v134 = vld [vmem:[#allocation7 + $0x208] sm:$0xff]
    %v135 = vld [vmem:[#allocation7 + $0x210] sm:$0xff]
    %v136 = vld [vmem:[#allocation7 + $0x218] sm:$0xff]
    %v137 = vld [vmem:[#allocation7 + $0x220] sm:$0xff]
    %v138 = vld [vmem:[#allocation7 + $0x228] sm:$0xff]
    %v139 = vld [vmem:[#allocation7 + $0x230] sm:$0xff]
    %v140 = vld [vmem:[#allocation7 + $0x238] sm:$0xff]
    %v141 = vld [vmem:[#allocation7 + $0x240] sm:$0xff]
    %v142 = vld [vmem:[#allocation7 + $0x248] sm:$0xff]
    %v143 = vld [vmem:[#allocation7 + $0x250] sm:$0xff]
    %v144 = vld [vmem:[#allocation7 + $0x258] sm:$0xff]
    %v145 = vld [vmem:[#allocation7 + $0x260] sm:$0xff]
    %v146 = vld [vmem:[#allocation7 + $0x268] sm:$0xff]
    %v147 = vld [vmem:[#allocation7 + $0x270] sm:$0xff]
    %v148 = vld [vmem:[#allocation7 + $0x278] sm:$0xff]
    %v149 = vld [vmem:[#allocation7 + $0x280] sm:$0xff]
    %v150 = vld [vmem:[#allocation7 + $0x288] sm:$0xff]
    %v151 = vld [vmem:[#allocation7 + $0x290] sm:$0xff]
    %v152 = vld [vmem:[#allocation7 + $0x298] sm:$0xff]
    %v153 = vld [vmem:[#allocation7 + $0x2a0] sm:$0xff]
    %v154 = vld [vmem:[#allocation7 + $0x2a8] sm:$0xff]
    %v155 = vld [vmem:[#allocation7 + $0x2b0] sm:$0xff]
    %v156 = vld [vmem:[#allocation7 + $0x2b8] sm:$0xff]
    %v157 = vld [vmem:[#allocation7 + $0x2c0] sm:$0xff]
    %v158 = vld [vmem:[#allocation7 + $0x2c8] sm:$0xff]
    %v159 = vld [vmem:[#allocation7 + $0x2d0] sm:$0xff]
    %v160 = vld [vmem:[#allocation7 + $0x2d8] sm:$0xff]
    %v161 = vld [vmem:[#allocation7 + $0x2e0] sm:$0xff]
    %v162 = vld [vmem:[#allocation7 + $0x2e8] sm:$0xff]
    %v163 = vld [vmem:[#allocation7 + $0x2f0] sm:$0xff]
    %v164 = vld [vmem:[#allocation7 + $0x2f8] sm:$0xff]
    %v165 = vld [vmem:[#allocation7 + $0x300] sm:$0xff]
    %v166 = vld [vmem:[#allocation7 + $0x308] sm:$0xff]
    %v167 = vld [vmem:[#allocation7 + $0x310] sm:$0xff]
    %v168 = vld [vmem:[#allocation7 + $0x318] sm:$0xff]
    %v169 = vld [vmem:[#allocation7 + $0x320] sm:$0xff]
    %v170 = vld [vmem:[#allocation7 + $0x328] sm:$0xff]
    %v171 = vld [vmem:[#allocation7 + $0x330] sm:$0xff]
    %v172 = vld [vmem:[#allocation7 + $0x338] sm:$0xff]
    %v173 = vld [vmem:[#allocation7 + $0x340] sm:$0xff]
    %v174 = vld [vmem:[#allocation7 + $0x348] sm:$0xff]
    %v175 = vld [vmem:[#allocation7 + $0x350] sm:$0xff]
    %v176 = vld [vmem:[#allocation7 + $0x358] sm:$0xff]
    %v177 = vld [vmem:[#allocation7 + $0x360] sm:$0xff]
    %v178 = vld [vmem:[#allocation7 + $0x368] sm:$0xff]
    %v179 = vld [vmem:[#allocation7 + $0x370] sm:$0xff]
    %v180 = vld [vmem:[#allocation7 + $0x378] sm:$0xff]
    %v181 = vld [vmem:[#allocation7 + $0x380] sm:$0xff]
    %v182 = vld [vmem:[#allocation7 + $0x388] sm:$0xff]
    %v183 = vld [vmem:[#allocation7 + $0x390] sm:$0xff]
    %v184 = vld [vmem:[#allocation7 + $0x398] sm:$0xff]
    %v185 = vld [vmem:[#allocation7 + $0x3a0] sm:$0xff]
    %v186 = vld [vmem:[#allocation7 + $0x3a8] sm:$0xff]
    %v187 = vld [vmem:[#allocation7 + $0x3b0] sm:$0xff]
    %v188 = vld [vmem:[#allocation7 + $0x3b8] sm:$0xff]
    %v189 = vld [vmem:[#allocation7 + $0x3c0] sm:$0xff]
    %v190 = vld [vmem:[#allocation7 + $0x3c8] sm:$0xff]
    %v191 = vld [vmem:[#allocation7 + $0x3d0] sm:$0xff]
    %v192 = vld [vmem:[#allocation7 + $0x3d8] sm:$0xff]
    %v193 = vld [vmem:[#allocation7 + $0x3e0] sm:$0xff]
    %v194 = vld [vmem:[#allocation7 + $0x3e8] sm:$0xff]
    %v195 = vld [vmem:[#allocation7 + $0x3f0] sm:$0xff]
    %v196 = vld [vmem:[#allocation7 + $0x3f8] sm:$0xff]
    %v197 = vld [vmem:[#allocation7 + $0x400] sm:$0xff]
    %v198 = vld [vmem:[#allocation7 + $0x408] sm:$0xff]
    %v199 = vld [vmem:[#allocation7 + $0x410] sm:$0xff]
    %v200 = vld [vmem:[#allocation7 + $0x418] sm:$0xff]
    %v201 = vld [vmem:[#allocation7 + $0x420] sm:$0xff]
    %v202 = vld [vmem:[#allocation7 + $0x428] sm:$0xff]
    %v203 = vld [vmem:[#allocation7 + $0x430] sm:$0xff]
    %v204 = vld [vmem:[#allocation7 + $0x438] sm:$0xff]
    %v205 = vld [vmem:[#allocation7 + $0x440] sm:$0xff]
    %v206 = vld [vmem:[#allocation7 + $0x448] sm:$0xff]
    %v207 = vld [vmem:[#allocation7 + $0x450] sm:$0xff]
    %v208 = vld [vmem:[#allocation7 + $0x458] sm:$0xff]
    %v209 = vld [vmem:[#allocation7 + $0x460] sm:$0xff]
    %v210 = vld [vmem:[#allocation7 + $0x468] sm:$0xff]
    %v211 = vld [vmem:[#allocation7 + $0x470] sm:$0xff]
    %v212 = vld [vmem:[#allocation7 + $0x478] sm:$0xff]
    %v213 = vld [vmem:[#allocation7 + $0x480] sm:$0xff]
    %v214 = vld [vmem:[#allocation7 + $0x488] sm:$0xff]
    %v215 = vld [vmem:[#allocation7 + $0x490] sm:$0xff]
    %v216 = vld [vmem:[#allocation7 + $0x498] sm:$0xff]
    %v217 = vld [vmem:[#allocation7 + $0x4a0] sm:$0xff]
    %v218 = vld [vmem:[#allocation7 + $0x4a8] sm:$0xff]
    %v219 = vld [vmem:[#allocation7 + $0x4b0] sm:$0xff]
    %v220 = vld [vmem:[#allocation7 + $0x4b8] sm:$0xff]
    %v221 = vld [vmem:[#allocation7 + $0x4c0] sm:$0xff]
    %v222 = vld [vmem:[#allocation7 + $0x4c8] sm:$0xff]
    %v223 = vld [vmem:[#allocation7 + $0x4d0] sm:$0xff]
    %v224 = vld [vmem:[#allocation7 + $0x4d8] sm:$0xff]
    %v225 = vld [vmem:[#allocation7 + $0x4e0] sm:$0xff]
    %v226 = vld [vmem:[#allocation7 + $0x4e8] sm:$0xff]
    %v227 = vld [vmem:[#allocation7 + $0x4f0] sm:$0xff]
    %v228 = vld [vmem:[#allocation7 + $0x4f8] sm:$0xff]
    %v229 = vld [vmem:[#allocation7 + $0x500] sm:$0xff]
    %v230 = vld [vmem:[#allocation7 + $0x508] sm:$0xff]
    %v231 = vld [vmem:[#allocation7 + $0x510] sm:$0xff]
    %v232 = vld [vmem:[#allocation7 + $0x518] sm:$0xff]
    %v233 = vld [vmem:[#allocation7 + $0x520] sm:$0xff]
    %v234 = vld [vmem:[#allocation7 + $0x528] sm:$0xff]
    %v235 = vld [vmem:[#allocation7 + $0x530] sm:$0xff]
    %v236 = vld [vmem:[#allocation7 + $0x538] sm:$0xff]
    %v237 = vld [vmem:[#allocation7 + $0x540] sm:$0xff]
    %v238 = vld [vmem:[#allocation7 + $0x548] sm:$0xff]
    %v239 = vld [vmem:[#allocation7 + $0x550] sm:$0xff]
    %v240 = vld [vmem:[#allocation7 + $0x558] sm:$0xff]
    %v241 = vld [vmem:[#allocation7 + $0x560] sm:$0xff]
    %v242 = vld [vmem:[#allocation7 + $0x568] sm:$0xff]
    %v243 = vld [vmem:[#allocation7 + $0x570] sm:$0xff]
    %v244 = vld [vmem:[#allocation7 + $0x578] sm:$0xff]
    %v245 = vld [vmem:[#allocation7 + $0x580] sm:$0xff]
    %v246 = vld [vmem:[#allocation7 + $0x588] sm:$0xff]
    %v247 = vld [vmem:[#allocation7 + $0x590] sm:$0xff]
    %v248 = vld [vmem:[#allocation7 + $0x598] sm:$0xff]
    %v249 = vld [vmem:[#allocation7 + $0x5a0] sm:$0xff]
    %v250 = vld [vmem:[#allocation7 + $0x5a8] sm:$0xff]
    %v251 = vld [vmem:[#allocation7 + $0x5b0] sm:$0xff]
    %v252 = vld [vmem:[#allocation7 + $0x5b8] sm:$0xff]
    %v253 = vld [vmem:[#allocation7 + $0x5c0] sm:$0xff]
    %v254 = vld [vmem:[#allocation7 + $0x5c8] sm:$0xff]
    %v255 = vld [vmem:[#allocation7 + $0x5d0] sm:$0xff]
    %v256 = vld [vmem:[#allocation7 + $0x5d8] sm:$0xff]
    %v257 = vld [vmem:[#allocation7 + $0x5e0] sm:$0xff]
    %v258 = vld [vmem:[#allocation7 + $0x5e8] sm:$0xff]
    %v259 = vld [vmem:[#allocation7 + $0x5f0] sm:$0xff]
    %v260 = vld [vmem:[#allocation7 + $0x5f8] sm:$0xff]
    %v261 = vld [vmem:[#allocation7 + $0x600] sm:$0xff]
    %v262 = vld [vmem:[#allocation7 + $0x608] sm:$0xff]
    %v263 = vld [vmem:[#allocation7 + $0x610] sm:$0xff]
    %v264 = vld [vmem:[#allocation7 + $0x618] sm:$0xff]
    %v265 = vld [vmem:[#allocation7 + $0x620] sm:$0xff]
    %v266 = vld [vmem:[#allocation7 + $0x628] sm:$0xff]
    %v267 = vld [vmem:[#allocation7 + $0x630] sm:$0xff]
    %v268 = vld [vmem:[#allocation7 + $0x638] sm:$0xff]
    %v269 = vld [vmem:[#allocation7 + $0x640] sm:$0xff]
    %v270 = vld [vmem:[#allocation7 + $0x648] sm:$0xff]
    %v271 = vld [vmem:[#allocation7 + $0x650] sm:$0xff]
    %v272 = vld [vmem:[#allocation7 + $0x658] sm:$0xff]
    %v273 = vld [vmem:[#allocation7 + $0x660] sm:$0xff]
    %v274 = vld [vmem:[#allocation7 + $0x668] sm:$0xff]
    %v275 = vld [vmem:[#allocation7 + $0x670] sm:$0xff]
    %v276 = vld [vmem:[#allocation7 + $0x678] sm:$0xff]
    %v277 = vld [vmem:[#allocation7 + $0x680] sm:$0xff]
    %v278 = vld [vmem:[#allocation7 + $0x688] sm:$0xff]
    %v279 = vld [vmem:[#allocation7 + $0x690] sm:$0xff]
    %v280 = vld [vmem:[#allocation7 + $0x698] sm:$0xff]
    %v281 = vld [vmem:[#allocation7 + $0x6a0] sm:$0xff]
    %v282 = vld [vmem:[#allocation7 + $0x6a8] sm:$0xff]
    %v283 = vld [vmem:[#allocation7 + $0x6b0] sm:$0xff]
    %v284 = vld [vmem:[#allocation7 + $0x6b8] sm:$0xff]
    %v285 = vld [vmem:[#allocation7 + $0x6c0] sm:$0xff]
    %v286 = vld [vmem:[#allocation7 + $0x6c8] sm:$0xff]
    %v287 = vld [vmem:[#allocation7 + $0x6d0] sm:$0xff]
    %v288 = vld [vmem:[#allocation7 + $0x6d8] sm:$0xff]
    %v289 = vld [vmem:[#allocation7 + $0x6e0] sm:$0xff]
    %v290 = vld [vmem:[#allocation7 + $0x6e8] sm:$0xff]
    %v291 = vld [vmem:[#allocation7 + $0x6f0] sm:$0xff]
    %v292 = vld [vmem:[#allocation7 + $0x6f8] sm:$0xff]
    %v293 = vld [vmem:[#allocation7 + $0x700] sm:$0xff]
    %v294 = vld [vmem:[#allocation7 + $0x708] sm:$0xff]
    %v295 = vld [vmem:[#allocation7 + $0x710] sm:$0xff]
    %v296 = vld [vmem:[#allocation7 + $0x718] sm:$0xff]
    %v297 = vld [vmem:[#allocation7 + $0x720] sm:$0xff]
    %v298 = vld [vmem:[#allocation7 + $0x728] sm:$0xff]
    %v299 = vld [vmem:[#allocation7 + $0x730] sm:$0xff]
    %v300 = vld [vmem:[#allocation7 + $0x738] sm:$0xff]
    %v301 = vld [vmem:[#allocation7 + $0x740] sm:$0xff]
    %v302 = vld [vmem:[#allocation7 + $0x748] sm:$0xff]
    %v303 = vld [vmem:[#allocation7 + $0x750] sm:$0xff]
    %v304 = vld [vmem:[#allocation7 + $0x758] sm:$0xff]
    %v305 = vld [vmem:[#allocation7 + $0x760] sm:$0xff]
    %v306 = vld [vmem:[#allocation7 + $0x768] sm:$0xff]
    %v307 = vld [vmem:[#allocation7 + $0x770] sm:$0xff]
    %v308 = vld [vmem:[#allocation7 + $0x778] sm:$0xff]
    %v309 = vld [vmem:[#allocation7 + $0x780] sm:$0xff]
    %v310 = vld [vmem:[#allocation7 + $0x788] sm:$0xff]
    %v311 = vld [vmem:[#allocation7 + $0x790] sm:$0xff]
    %v312 = vld [vmem:[#allocation7 + $0x798] sm:$0xff]
    %v313 = vld [vmem:[#allocation7 + $0x7a0] sm:$0xff]
    %v314 = vld [vmem:[#allocation7 + $0x7a8] sm:$0xff]
    %v315 = vld [vmem:[#allocation7 + $0x7b0] sm:$0xff]
    %v316 = vld [vmem:[#allocation7 + $0x7b8] sm:$0xff]
    %v317 = vld [vmem:[#allocation7 + $0x7c0] sm:$0xff]
    %v318 = vld [vmem:[#allocation7 + $0x7c8] sm:$0xff]
    %v319 = vld [vmem:[#allocation7 + $0x7d0] sm:$0xff]
    %v320 = vld [vmem:[#allocation7 + $0x7d8] sm:$0xff]
    %v321 = vld [vmem:[#allocation7 + $0x7e0] sm:$0xff]
    %v322 = vld [vmem:[#allocation7 + $0x7e8] sm:$0xff]
    %v323 = vld [vmem:[#allocation7 + $0x7f0] sm:$0xff]
    %v324 = vld [vmem:[#allocation7 + $0x7f8] sm:$0xff]
    %v325 = vld [vmem:[#allocation7 + $0x800] sm:$0xff]
    %v326 = vld [vmem:[#allocation7 + $0x808] sm:$0xff]
    %v327 = vld [vmem:[#allocation7 + $0x810] sm:$0xff]
    %v328 = vld [vmem:[#allocation7 + $0x818] sm:$0xff]
    %v329 = vld [vmem:[#allocation7 + $0x820] sm:$0xff]
    %v330 = vld [vmem:[#allocation7 + $0x828] sm:$0xff]
    %v331 = vld [vmem:[#allocation7 + $0x830] sm:$0xff]
    %v332 = vld [vmem:[#allocation7 + $0x838] sm:$0xff]
    %v333 = vld [vmem:[#allocation7 + $0x840] sm:$0xff]
    %v334 = vld [vmem:[#allocation7 + $0x848] sm:$0xff]
    %v335 = vld [vmem:[#allocation7 + $0x850] sm:$0xff]
    %v336 = vld [vmem:[#allocation7 + $0x858] sm:$0xff]
    %v337 = vld [vmem:[#allocation7 + $0x860] sm:$0xff]
    %v338 = vld [vmem:[#allocation7 + $0x868] sm:$0xff]
    %v339 = vld [vmem:[#allocation7 + $0x870] sm:$0xff]
    %v340 = vld [vmem:[#allocation7 + $0x878] sm:$0xff]
    %v341 = vld [vmem:[#allocation7 + $0x880] sm:$0xff]
    %v342 = vld [vmem:[#allocation7 + $0x888] sm:$0xff]
    %v343 = vld [vmem:[#allocation7 + $0x890] sm:$0xff]
    %v344 = vld [vmem:[#allocation7 + $0x898] sm:$0xff]
    %v345 = vld [vmem:[#allocation7 + $0x8a0] sm:$0xff]
    %v346 = vld [vmem:[#allocation7 + $0x8a8] sm:$0xff]
    %v347 = vld [vmem:[#allocation7 + $0x8b0] sm:$0xff]
    %v348 = vld [vmem:[#allocation7 + $0x8b8] sm:$0xff]
    %v349 = vld [vmem:[#allocation7 + $0x8c0] sm:$0xff]
    %v350 = vld [vmem:[#allocation7 + $0x8c8] sm:$0xff]
    %v351 = vld [vmem:[#allocation7 + $0x8d0] sm:$0xff]
    %v352 = vld [vmem:[#allocation7 + $0x8d8] sm:$0xff]
    %v353 = vld [vmem:[#allocation7 + $0x8e0] sm:$0xff]
    %v354 = vld [vmem:[#allocation7 + $0x8e8] sm:$0xff]
    %v355 = vld [vmem:[#allocation7 + $0x8f0] sm:$0xff]
    %v356 = vld [vmem:[#allocation7 + $0x8f8] sm:$0xff]
    %v357 = vld [vmem:[#allocation7 + $0x900] sm:$0xff]
    %v358 = vld [vmem:[#allocation7 + $0x908] sm:$0xff]
    %v359 = vld [vmem:[#allocation7 + $0x910] sm:$0xff]
    %v360 = vld [vmem:[#allocation7 + $0x918] sm:$0xff]
    %v361 = vld [vmem:[#allocation7 + $0x920] sm:$0xff]
    %v362 = vld [vmem:[#allocation7 + $0x928] sm:$0xff]
    %v363 = vld [vmem:[#allocation7 + $0x930] sm:$0xff]
    %v364 = vld [vmem:[#allocation7 + $0x938] sm:$0xff]
    %v365 = vld [vmem:[#allocation7 + $0x940] sm:$0xff]
    %v366 = vld [vmem:[#allocation7 + $0x948] sm:$0xff]
    %v367 = vld [vmem:[#allocation7 + $0x950] sm:$0xff]
    %v368 = vld [vmem:[#allocation7 + $0x958] sm:$0xff]
    %v369 = vld [vmem:[#allocation7 + $0x960] sm:$0xff]
    %v370 = vld [vmem:[#allocation7 + $0x968] sm:$0xff]
    %v371 = vld [vmem:[#allocation7 + $0x970] sm:$0xff]
    %v372 = vld [vmem:[#allocation7 + $0x978] sm:$0xff]
    %v373 = vld [vmem:[#allocation7 + $0x980] sm:$0xff]
    %v374 = vld [vmem:[#allocation7 + $0x988] sm:$0xff]
    %v375 = vld [vmem:[#allocation7 + $0x990] sm:$0xff]
    %v376 = vld [vmem:[#allocation7 + $0x998] sm:$0xff]
    %v377 = vld [vmem:[#allocation7 + $0x9a0] sm:$0xff]
    %v378 = vld [vmem:[#allocation7 + $0x9a8] sm:$0xff]
    %v379 = vld [vmem:[#allocation7 + $0x9b0] sm:$0xff]
    %v380 = vld [vmem:[#allocation7 + $0x9b8] sm:$0xff]
    %v381 = vld [vmem:[#allocation7 + $0x9c0] sm:$0xff]
    %v382 = vld [vmem:[#allocation7 + $0x9c8] sm:$0xff]
    %v383 = vld [vmem:[#allocation7 + $0x9d0] sm:$0xff]
    %v384 = vld [vmem:[#allocation7 + $0x9d8] sm:$0xff]
    %v385 = vld [vmem:[#allocation7 + $0x9e0] sm:$0xff]
    %v386 = vld [vmem:[#allocation7 + $0x9e8] sm:$0xff]
    %v387 = vld [vmem:[#allocation7 + $0x9f0] sm:$0xff]
    %v388 = vld [vmem:[#allocation7 + $0x9f8] sm:$0xff]
    %v389 = vld [vmem:[#allocation7 + $0xa00] sm:$0xff]
    %v390 = vld [vmem:[#allocation7 + $0xa08] sm:$0xff]
    %v391 = vld [vmem:[#allocation7 + $0xa10] sm:$0xff]
    %v392 = vld [vmem:[#allocation7 + $0xa18] sm:$0xff]
    %v393 = vld [vmem:[#allocation7 + $0xa20] sm:$0xff]
    %v394 = vld [vmem:[#allocation7 + $0xa28] sm:$0xff]
    %v395 = vld [vmem:[#allocation7 + $0xa30] sm:$0xff]
    %v396 = vld [vmem:[#allocation7 + $0xa38] sm:$0xff]
    %v397 = vld [vmem:[#allocation7 + $0xa40] sm:$0xff]
    %v398 = vld [vmem:[#allocation7 + $0xa48] sm:$0xff]
    %v399 = vld [vmem:[#allocation7 + $0xa50] sm:$0xff]
    %v400 = vld [vmem:[#allocation7 + $0xa58] sm:$0xff]
    %v401 = vld [vmem:[#allocation7 + $0xa60] sm:$0xff]
    %v402 = vld [vmem:[#allocation7 + $0xa68] sm:$0xff]
    %v403 = vld [vmem:[#allocation7 + $0xa70] sm:$0xff]
    %v404 = vld [vmem:[#allocation7 + $0xa78] sm:$0xff]
    %v405 = vld [vmem:[#allocation7 + $0xa80] sm:$0xff]
    %v406 = vld [vmem:[#allocation7 + $0xa88] sm:$0xff]
    %v407 = vld [vmem:[#allocation7 + $0xa90] sm:$0xff]
    %v408 = vld [vmem:[#allocation7 + $0xa98] sm:$0xff]
    %v409 = vld [vmem:[#allocation7 + $0xaa0] sm:$0xff]
    %v410 = vld [vmem:[#allocation7 + $0xaa8] sm:$0xff]
    %v411 = vld [vmem:[#allocation7 + $0xab0] sm:$0xff]
    %v412 = vld [vmem:[#allocation7 + $0xab8] sm:$0xff]
    %v413 = vld [vmem:[#allocation7 + $0xac0] sm:$0xff]
    %v414 = vld [vmem:[#allocation7 + $0xac8] sm:$0xff]
    %v415 = vld [vmem:[#allocation7 + $0xad0] sm:$0xff]
    %v416 = vld [vmem:[#allocation7 + $0xad8] sm:$0xff]
    %v417 = vld [vmem:[#allocation7 + $0xae0] sm:$0xff]
    %v418 = vld [vmem:[#allocation7 + $0xae8] sm:$0xff]
    %v419 = vld [vmem:[#allocation7 + $0xaf0] sm:$0xff]
    %v420 = vld [vmem:[#allocation7 + $0xaf8] sm:$0xff]
    %v421 = vld [vmem:[#allocation7 + $0xb00] sm:$0xff]
    %v422 = vld [vmem:[#allocation7 + $0xb08] sm:$0xff]
    %v423 = vld [vmem:[#allocation7 + $0xb10] sm:$0xff]
    %v424 = vld [vmem:[#allocation7 + $0xb18] sm:$0xff]
    %v425 = vld [vmem:[#allocation7 + $0xb20] sm:$0xff]
    %v426 = vld [vmem:[#allocation7 + $0xb28] sm:$0xff]
    %v427 = vld [vmem:[#allocation7 + $0xb30] sm:$0xff]
    %v428 = vld [vmem:[#allocation7 + $0xb38] sm:$0xff]
    %v429 = vld [vmem:[#allocation7 + $0xb40] sm:$0xff]
    %v430 = vld [vmem:[#allocation7 + $0xb48] sm:$0xff]
    %v431 = vld [vmem:[#allocation7 + $0xb50] sm:$0xff]
    %v432 = vld [vmem:[#allocation7 + $0xb58] sm:$0xff]
    %v433 = vld [vmem:[#allocation7 + $0xb60] sm:$0xff]
    %v434 = vld [vmem:[#allocation7 + $0xb68] sm:$0xff]
    %v435 = vld [vmem:[#allocation7 + $0xb70] sm:$0xff]
    %v436 = vld [vmem:[#allocation7 + $0xb78] sm:$0xff]
    %v437 = vld [vmem:[#allocation7 + $0xb80] sm:$0xff]
    %v438 = vld [vmem:[#allocation7 + $0xb88] sm:$0xff]
    %v439 = vld [vmem:[#allocation7 + $0xb90] sm:$0xff]
    %v440 = vld [vmem:[#allocation7 + $0xb98] sm:$0xff]
    %v441 = vld [vmem:[#allocation7 + $0xba0] sm:$0xff]
    %v442 = vld [vmem:[#allocation7 + $0xba8] sm:$0xff]
    %v443 = vld [vmem:[#allocation7 + $0xbb0] sm:$0xff]
    %v444 = vld [vmem:[#allocation7 + $0xbb8] sm:$0xff]
    %v445 = vld [vmem:[#allocation7 + $0xbc0] sm:$0xff]
    %v446 = vld [vmem:[#allocation7 + $0xbc8] sm:$0xff]
    %v447 = vld [vmem:[#allocation7 + $0xbd0] sm:$0xff]
    %v448 = vld [vmem:[#allocation7 + $0xbd8] sm:$0xff]
    %v449 = vld [vmem:[#allocation7 + $0xbe0] sm:$0xff]
    %v450 = vld [vmem:[#allocation7 + $0xbe8] sm:$0xff]
    %v451 = vld [vmem:[#allocation7 + $0xbf0] sm:$0xff]
    %v452 = vld [vmem:[#allocation7 + $0xbf8] sm:$0xff]
    %v453 = vld [vmem:[#allocation5] sm:$0xff]
    %v454 = vld [vmem:[#allocation5 + $0x8] sm:$0xff]
    %v455 = vld [vmem:[#allocation5 + $0x10] sm:$0xff]
    %v456 = vld [vmem:[#allocation5 + $0x18] sm:$0xff]
    %v457 = vld [vmem:[#allocation5 + $0x20] sm:$0xff]
    %v458 = vld [vmem:[#allocation5 + $0x28] sm:$0xff]
    %v459 = vld [vmem:[#allocation5 + $0x30] sm:$0xff]
    %v460 = vld [vmem:[#allocation5 + $0x38] sm:$0xff]
    %v461 = vld [vmem:[#allocation5 + $0x40] sm:$0xff]
    %v462 = vld [vmem:[#allocation5 + $0x48] sm:$0xff]
    %v463 = vld [vmem:[#allocation5 + $0x50] sm:$0xff]
    %v464 = vld [vmem:[#allocation5 + $0x58] sm:$0xff]
    %v465 = vld [vmem:[#allocation5 + $0x60] sm:$0x3]
    %v466 = vld [vmem:[#allocation5 + $0x68] sm:$0x3]
    %v467 = vld [vmem:[#allocation5 + $0x70] sm:$0x3]
    %v468 = vld [vmem:[#allocation5 + $0x78] sm:$0x3]
    %v469 = vld [vmem:[#allocation5 + $0x80] sm:$0x3]
    %v470 = vld [vmem:[#allocation5 + $0x88] sm:$0x3]
    %v471 = vpack.c.bf16 %v459, %v453
    %v472 = vpack.c.bf16 %v460, %v454
    %v473 = vpack.c.bf16 %v461, %v455
    %v474 = vpack.c.bf16 %v462, %v456
    %v475 = vpack.c.bf16 %v463, %v457
    %v476 = vpack.c.bf16 %v464, %v458
    %v477 = vpack.c.bf16 %v465, %v465
    %v478 = vpack.c.bf16 %v466, %v466
    %v479 = vpack.c.bf16 %v467, %v467
    %v480 = vpack.c.bf16 %v468, %v468
    %v481 = vpack.c.bf16 %v469, %v469
    %v482 = vpack.c.bf16 %v470, %v470
    %v483 = vld [vmem:[#allocation8] sm:$0xff]
    %v485 = vlaneseq
    %v486 = vshrl.u32 %v485, 7
    %v487 = vsub.s32 0, %v486
    %v488 = vrot.slane %v483, %v487
    %v489 = vlaneseq
    %v490 = vshrl.u32 %v489, 7
    %v491 = vsub.s32 1, %v490
    %v492 = vrot.slane %v483, %v491
    %v493 = vlaneseq
    %v494 = vshrl.u32 %v493, 7
    %v495 = vsub.s32 2, %v494
    %v496 = vrot.slane %v483, %v495
    %v497 = vlaneseq
    %v498 = vshrl.u32 %v497, 7
    %v499 = vsub.s32 3, %v498
    %v500 = vrot.slane %v483, %v499
    %v501 = vlaneseq
    %v502 = vshrl.u32 %v501, 7
    %v503 = vsub.s32 4, %v502
    %v504 = vrot.slane %v483, %v503
    %v505 = vlaneseq
    %v506 = vshrl.u32 %v505, 7
    %v507 = vsub.s32 5, %v506
    %v508 = vrot.slane %v483, %v507
    %v509 = vlaneseq
    %v510 = vshrl.u32 %v509, 7
    %v511 = vsub.s32 6, %v510
    %v512 = vrot.slane %v483, %v511
    %v513 = vlaneseq
    %v514 = vshrl.u32 %v513, 7
    %v515 = vsub.s32 7, %v514
    %v516 = vrot.slane %v483, %v515
    %v909 = vunpack.c.l.b16 %v69
    %v910 = vunpack.c.h.b16 %v69
    %v911 = vunpack.c.l.b16 %v70
    %v912 = vunpack.c.h.b16 %v70
    %v913 = vunpack.c.l.b16 %v71
    %v914 = vunpack.c.h.b16 %v71
    %v915 = vunpack.c.l.b16 %v72
    %v916 = vunpack.c.h.b16 %v72
    %v917 = vunpack.c.l.b16 %v73
    %v918 = vunpack.c.h.b16 %v73
    %v919 = vunpack.c.l.b16 %v74
    %v920 = vunpack.c.h.b16 %v74
    %v921 = vunpack.c.l.b16 %v75
    %v922 = vunpack.c.h.b16 %v75
    %v923 = vunpack.c.l.b16 %v76
    %v924 = vunpack.c.h.b16 %v76
    %v925 = vunpack.c.l.b16 %v77
    %v926 = vunpack.c.h.b16 %v77
    %v927 = vunpack.c.l.b16 %v78
    %v928 = vunpack.c.h.b16 %v78
    %v929 = vunpack.c.l.b16 %v79
    %v930 = vunpack.c.h.b16 %v79
    %v931 = vunpack.c.l.b16 %v80
    %v932 = vunpack.c.h.b16 %v80
    %v933 = vunpack.c.l.b16 %v81
    %v934 = vunpack.c.h.b16 %v81
    %v935 = vunpack.c.l.b16 %v82
    %v936 = vunpack.c.h.b16 %v82
    %v937 = vunpack.c.l.b16 %v83
    %v938 = vunpack.c.h.b16 %v83
    %v939 = vunpack.c.l.b16 %v84
    %v940 = vunpack.c.h.b16 %v84
    %v941 = vunpack.c.l.b16 %v85
    %v942 = vunpack.c.h.b16 %v85
    %v943 = vunpack.c.l.b16 %v86
    %v944 = vunpack.c.h.b16 %v86
    %v945 = vunpack.c.l.b16 %v87
    %v946 = vunpack.c.h.b16 %v87
    %v947 = vunpack.c.l.b16 %v88
    %v948 = vunpack.c.h.b16 %v88
    %v949 = vunpack.c.l.b16 %v89
    %v950 = vunpack.c.h.b16 %v89
    %v951 = vunpack.c.l.b16 %v90
    %v952 = vunpack.c.h.b16 %v90
    %v953 = vunpack.c.l.b16 %v91
    %v954 = vunpack.c.h.b16 %v91
    %v955 = vunpack.c.l.b16 %v92
    %v956 = vunpack.c.h.b16 %v92
    %v957 = vunpack.c.l.b16 %v93
    %v958 = vunpack.c.h.b16 %v93
    %v959 = vunpack.c.l.b16 %v94
    %v960 = vunpack.c.h.b16 %v94
    %v961 = vunpack.c.l.b16 %v95
    %v962 = vunpack.c.h.b16 %v95
    %v963 = vunpack.c.l.b16 %v96
    %v964 = vunpack.c.h.b16 %v96
    %v965 = vunpack.c.l.b16 %v97
    %v966 = vunpack.c.h.b16 %v97
    %v967 = vunpack.c.l.b16 %v98
    %v968 = vunpack.c.h.b16 %v98
    %v969 = vunpack.c.l.b16 %v99
    %v970 = vunpack.c.h.b16 %v99
    %v971 = vunpack.c.l.b16 %v100
    %v972 = vunpack.c.h.b16 %v100
    %v973 = vunpack.c.l.b16 %v101
    %v974 = vunpack.c.h.b16 %v101
    %v975 = vunpack.c.l.b16 %v102
    %v976 = vunpack.c.h.b16 %v102
    %v977 = vunpack.c.l.b16 %v103
    %v978 = vunpack.c.h.b16 %v103
    %v979 = vunpack.c.l.b16 %v104
    %v980 = vunpack.c.h.b16 %v104
    %v981 = vunpack.c.l.b16 %v105
    %v982 = vunpack.c.h.b16 %v105
    %v983 = vunpack.c.l.b16 %v106
    %v984 = vunpack.c.h.b16 %v106
    %v985 = vunpack.c.l.b16 %v107
    %v986 = vunpack.c.h.b16 %v107
    %v987 = vunpack.c.l.b16 %v108
    %v988 = vunpack.c.h.b16 %v108
    %v989 = vunpack.c.l.b16 %v109
    %v990 = vunpack.c.h.b16 %v109
    %v991 = vunpack.c.l.b16 %v110
    %v992 = vunpack.c.h.b16 %v110
    %v993 = vunpack.c.l.b16 %v111
    %v994 = vunpack.c.h.b16 %v111
    %v995 = vunpack.c.l.b16 %v112
    %v996 = vunpack.c.h.b16 %v112
    %v997 = vunpack.c.l.b16 %v113
    %v998 = vunpack.c.h.b16 %v113
    %v999 = vunpack.c.l.b16 %v114
    %v1000 = vunpack.c.h.b16 %v114
    %v1001 = vunpack.c.l.b16 %v115
    %v1002 = vunpack.c.h.b16 %v115
    %v1003 = vunpack.c.l.b16 %v116
    %v1004 = vunpack.c.h.b16 %v116
    %v1005 = vunpack.c.l.b16 %v117
    %v1006 = vunpack.c.h.b16 %v117
    %v1007 = vunpack.c.l.b16 %v118
    %v1008 = vunpack.c.h.b16 %v118
    %v1009 = vunpack.c.l.b16 %v119
    %v1010 = vunpack.c.h.b16 %v119
    %v1011 = vunpack.c.l.b16 %v120
    %v1012 = vunpack.c.h.b16 %v120
    %v1013 = vunpack.c.l.b16 %v121
    %v1014 = vunpack.c.h.b16 %v121
    %v1015 = vunpack.c.l.b16 %v122
    %v1016 = vunpack.c.h.b16 %v122
    %v1017 = vunpack.c.l.b16 %v123
    %v1018 = vunpack.c.h.b16 %v123
    %v1019 = vunpack.c.l.b16 %v124
    %v1020 = vunpack.c.h.b16 %v124
    %v1021 = vunpack.c.l.b16 %v125
    %v1022 = vunpack.c.h.b16 %v125
    %v1023 = vunpack.c.l.b16 %v126
    %v1024 = vunpack.c.h.b16 %v126
    %v1025 = vunpack.c.l.b16 %v127
    %v1026 = vunpack.c.h.b16 %v127
    %v1027 = vunpack.c.l.b16 %v128
    %v1028 = vunpack.c.h.b16 %v128
    %v1029 = vunpack.c.l.b16 %v129
    %v1030 = vunpack.c.h.b16 %v129
    %v1031 = vunpack.c.l.b16 %v130
    %v1032 = vunpack.c.h.b16 %v130
    %v1033 = vunpack.c.l.b16 %v131
    %v1034 = vunpack.c.h.b16 %v131
    %v1035 = vunpack.c.l.b16 %v132
    %v1036 = vunpack.c.h.b16 %v132
    %v1037 = vunpack.c.l.b16 %v133
    %v1038 = vunpack.c.h.b16 %v133
    %v1039 = vunpack.c.l.b16 %v134
    %v1040 = vunpack.c.h.b16 %v134
    %v1041 = vunpack.c.l.b16 %v135
    %v1042 = vunpack.c.h.b16 %v135
    %v1043 = vunpack.c.l.b16 %v136
    %v1044 = vunpack.c.h.b16 %v136
    %v1045 = vunpack.c.l.b16 %v137
    %v1046 = vunpack.c.h.b16 %v137
    %v1047 = vunpack.c.l.b16 %v138
    %v1048 = vunpack.c.h.b16 %v138
    %v1049 = vunpack.c.l.b16 %v139
    %v1050 = vunpack.c.h.b16 %v139
    %v1051 = vunpack.c.l.b16 %v140
    %v1052 = vunpack.c.h.b16 %v140
    %v1053 = vunpack.c.l.b16 %v141
    %v1054 = vunpack.c.h.b16 %v141
    %v1055 = vunpack.c.l.b16 %v142
    %v1056 = vunpack.c.h.b16 %v142
    %v1057 = vunpack.c.l.b16 %v143
    %v1058 = vunpack.c.h.b16 %v143
    %v1059 = vunpack.c.l.b16 %v144
    %v1060 = vunpack.c.h.b16 %v144
    %v1061 = vunpack.c.l.b16 %v145
    %v1062 = vunpack.c.h.b16 %v145
    %v1063 = vunpack.c.l.b16 %v146
    %v1064 = vunpack.c.h.b16 %v146
    %v1065 = vunpack.c.l.b16 %v147
    %v1066 = vunpack.c.h.b16 %v147
    %v1067 = vunpack.c.l.b16 %v148
    %v1068 = vunpack.c.h.b16 %v148
    %v1069 = vunpack.c.l.b16 %v149
    %v1070 = vunpack.c.h.b16 %v149
    %v1071 = vunpack.c.l.b16 %v150
    %v1072 = vunpack.c.h.b16 %v150
    %v1073 = vunpack.c.l.b16 %v151
    %v1074 = vunpack.c.h.b16 %v151
    %v1075 = vunpack.c.l.b16 %v152
    %v1076 = vunpack.c.h.b16 %v152
    %v1077 = vunpack.c.l.b16 %v153
    %v1078 = vunpack.c.h.b16 %v153
    %v1079 = vunpack.c.l.b16 %v154
    %v1080 = vunpack.c.h.b16 %v154
    %v1081 = vunpack.c.l.b16 %v155
    %v1082 = vunpack.c.h.b16 %v155
    %v1083 = vunpack.c.l.b16 %v156
    %v1084 = vunpack.c.h.b16 %v156
    %v1085 = vunpack.c.l.b16 %v157
    %v1086 = vunpack.c.h.b16 %v157
    %v1087 = vunpack.c.l.b16 %v158
    %v1088 = vunpack.c.h.b16 %v158
    %v1089 = vunpack.c.l.b16 %v159
    %v1090 = vunpack.c.h.b16 %v159
    %v1091 = vunpack.c.l.b16 %v160
    %v1092 = vunpack.c.h.b16 %v160
    %v1093 = vunpack.c.l.b16 %v161
    %v1094 = vunpack.c.h.b16 %v161
    %v1095 = vunpack.c.l.b16 %v162
    %v1096 = vunpack.c.h.b16 %v162
    %v1097 = vunpack.c.l.b16 %v163
    %v1098 = vunpack.c.h.b16 %v163
    %v1099 = vunpack.c.l.b16 %v164
    %v1100 = vunpack.c.h.b16 %v164
    %v1101 = vunpack.c.l.b16 %v165
    %v1102 = vunpack.c.h.b16 %v165
    %v1103 = vunpack.c.l.b16 %v166
    %v1104 = vunpack.c.h.b16 %v166
    %v1105 = vunpack.c.l.b16 %v167
    %v1106 = vunpack.c.h.b16 %v167
    %v1107 = vunpack.c.l.b16 %v168
    %v1108 = vunpack.c.h.b16 %v168
    %v1109 = vunpack.c.l.b16 %v169
    %v1110 = vunpack.c.h.b16 %v169
    %v1111 = vunpack.c.l.b16 %v170
    %v1112 = vunpack.c.h.b16 %v170
    %v1113 = vunpack.c.l.b16 %v171
    %v1114 = vunpack.c.h.b16 %v171
    %v1115 = vunpack.c.l.b16 %v172
    %v1116 = vunpack.c.h.b16 %v172
    %v1117 = vunpack.c.l.b16 %v173
    %v1118 = vunpack.c.h.b16 %v173
    %v1119 = vunpack.c.l.b16 %v174
    %v1120 = vunpack.c.h.b16 %v174
    %v1121 = vunpack.c.l.b16 %v175
    %v1122 = vunpack.c.h.b16 %v175
    %v1123 = vunpack.c.l.b16 %v176
    %v1124 = vunpack.c.h.b16 %v176
    %v1125 = vunpack.c.l.b16 %v177
    %v1126 = vunpack.c.h.b16 %v177
    %v1127 = vunpack.c.l.b16 %v178
    %v1128 = vunpack.c.h.b16 %v178
    %v1129 = vunpack.c.l.b16 %v179
    %v1130 = vunpack.c.h.b16 %v179
    %v1131 = vunpack.c.l.b16 %v180
    %v1132 = vunpack.c.h.b16 %v180
    %v1133 = vunpack.c.l.b16 %v181
    %v1134 = vunpack.c.h.b16 %v181
    %v1135 = vunpack.c.l.b16 %v182
    %v1136 = vunpack.c.h.b16 %v182
    %v1137 = vunpack.c.l.b16 %v183
    %v1138 = vunpack.c.h.b16 %v183
    %v1139 = vunpack.c.l.b16 %v184
    %v1140 = vunpack.c.h.b16 %v184
    %v1141 = vunpack.c.l.b16 %v185
    %v1142 = vunpack.c.h.b16 %v185
    %v1143 = vunpack.c.l.b16 %v186
    %v1144 = vunpack.c.h.b16 %v186
    %v1145 = vunpack.c.l.b16 %v187
    %v1146 = vunpack.c.h.b16 %v187
    %v1147 = vunpack.c.l.b16 %v188
    %v1148 = vunpack.c.h.b16 %v188
    %v1149 = vunpack.c.l.b16 %v189
    %v1150 = vunpack.c.h.b16 %v189
    %v1151 = vunpack.c.l.b16 %v190
    %v1152 = vunpack.c.h.b16 %v190
    %v1153 = vunpack.c.l.b16 %v191
    %v1154 = vunpack.c.h.b16 %v191
    %v1155 = vunpack.c.l.b16 %v192
    %v1156 = vunpack.c.h.b16 %v192
    %v1157 = vunpack.c.l.b16 %v193
    %v1158 = vunpack.c.h.b16 %v193
    %v1159 = vunpack.c.l.b16 %v194
    %v1160 = vunpack.c.h.b16 %v194
    %v1161 = vunpack.c.l.b16 %v195
    %v1162 = vunpack.c.h.b16 %v195
    %v1163 = vunpack.c.l.b16 %v196
    %v1164 = vunpack.c.h.b16 %v196
    %v1165 = vunpack.c.l.b16 %v197
    %v1166 = vunpack.c.h.b16 %v197
    %v1167 = vunpack.c.l.b16 %v198
    %v1168 = vunpack.c.h.b16 %v198
    %v1169 = vunpack.c.l.b16 %v199
    %v1170 = vunpack.c.h.b16 %v199
    %v1171 = vunpack.c.l.b16 %v200
    %v1172 = vunpack.c.h.b16 %v200
    %v1173 = vunpack.c.l.b16 %v201
    %v1174 = vunpack.c.h.b16 %v201
    %v1175 = vunpack.c.l.b16 %v202
    %v1176 = vunpack.c.h.b16 %v202
    %v1177 = vunpack.c.l.b16 %v203
    %v1178 = vunpack.c.h.b16 %v203
    %v1179 = vunpack.c.l.b16 %v204
    %v1180 = vunpack.c.h.b16 %v204
    %v1181 = vunpack.c.l.b16 %v205
    %v1182 = vunpack.c.h.b16 %v205
    %v1183 = vunpack.c.l.b16 %v206
    %v1184 = vunpack.c.h.b16 %v206
    %v1185 = vunpack.c.l.b16 %v207
    %v1186 = vunpack.c.h.b16 %v207
    %v1187 = vunpack.c.l.b16 %v208
    %v1188 = vunpack.c.h.b16 %v208
    %v1189 = vunpack.c.l.b16 %v209
    %v1190 = vunpack.c.h.b16 %v209
    %v1191 = vunpack.c.l.b16 %v210
    %v1192 = vunpack.c.h.b16 %v210
    %v1193 = vunpack.c.l.b16 %v211
    %v1194 = vunpack.c.h.b16 %v211
    %v1195 = vunpack.c.l.b16 %v212
    %v1196 = vunpack.c.h.b16 %v212
    %v1197 = vunpack.c.l.b16 %v213
    %v1198 = vunpack.c.h.b16 %v213
    %v1199 = vunpack.c.l.b16 %v214
    %v1200 = vunpack.c.h.b16 %v214
    %v1201 = vunpack.c.l.b16 %v215
    %v1202 = vunpack.c.h.b16 %v215
    %v1203 = vunpack.c.l.b16 %v216
    %v1204 = vunpack.c.h.b16 %v216
    %v1205 = vunpack.c.l.b16 %v217
    %v1206 = vunpack.c.h.b16 %v217
    %v1207 = vunpack.c.l.b16 %v218
    %v1208 = vunpack.c.h.b16 %v218
    %v1209 = vunpack.c.l.b16 %v219
    %v1210 = vunpack.c.h.b16 %v219
    %v1211 = vunpack.c.l.b16 %v220
    %v1212 = vunpack.c.h.b16 %v220
    %v1213 = vunpack.c.l.b16 %v221
    %v1214 = vunpack.c.h.b16 %v221
    %v1215 = vunpack.c.l.b16 %v222
    %v1216 = vunpack.c.h.b16 %v222
    %v1217 = vunpack.c.l.b16 %v223
    %v1218 = vunpack.c.h.b16 %v223
    %v1219 = vunpack.c.l.b16 %v224
    %v1220 = vunpack.c.h.b16 %v224
    %v1221 = vunpack.c.l.b16 %v225
    %v1222 = vunpack.c.h.b16 %v225
    %v1223 = vunpack.c.l.b16 %v226
    %v1224 = vunpack.c.h.b16 %v226
    %v1225 = vunpack.c.l.b16 %v227
    %v1226 = vunpack.c.h.b16 %v227
    %v1227 = vunpack.c.l.b16 %v228
    %v1228 = vunpack.c.h.b16 %v228
    %v1229 = vunpack.c.l.b16 %v229
    %v1230 = vunpack.c.h.b16 %v229
    %v1231 = vunpack.c.l.b16 %v230
    %v1232 = vunpack.c.h.b16 %v230
    %v1233 = vunpack.c.l.b16 %v231
    %v1234 = vunpack.c.h.b16 %v231
    %v1235 = vunpack.c.l.b16 %v232
    %v1236 = vunpack.c.h.b16 %v232
    %v1237 = vunpack.c.l.b16 %v233
    %v1238 = vunpack.c.h.b16 %v233
    %v1239 = vunpack.c.l.b16 %v234
    %v1240 = vunpack.c.h.b16 %v234
    %v1241 = vunpack.c.l.b16 %v235
    %v1242 = vunpack.c.h.b16 %v235
    %v1243 = vunpack.c.l.b16 %v236
    %v1244 = vunpack.c.h.b16 %v236
    %v1245 = vunpack.c.l.b16 %v237
    %v1246 = vunpack.c.h.b16 %v237
    %v1247 = vunpack.c.l.b16 %v238
    %v1248 = vunpack.c.h.b16 %v238
    %v1249 = vunpack.c.l.b16 %v239
    %v1250 = vunpack.c.h.b16 %v239
    %v1251 = vunpack.c.l.b16 %v240
    %v1252 = vunpack.c.h.b16 %v240
    %v1253 = vunpack.c.l.b16 %v241
    %v1254 = vunpack.c.h.b16 %v241
    %v1255 = vunpack.c.l.b16 %v242
    %v1256 = vunpack.c.h.b16 %v242
    %v1257 = vunpack.c.l.b16 %v243
    %v1258 = vunpack.c.h.b16 %v243
    %v1259 = vunpack.c.l.b16 %v244
    %v1260 = vunpack.c.h.b16 %v244
    %v1261 = vunpack.c.l.b16 %v245
    %v1262 = vunpack.c.h.b16 %v245
    %v1263 = vunpack.c.l.b16 %v246
    %v1264 = vunpack.c.h.b16 %v246
    %v1265 = vunpack.c.l.b16 %v247
    %v1266 = vunpack.c.h.b16 %v247
    %v1267 = vunpack.c.l.b16 %v248
    %v1268 = vunpack.c.h.b16 %v248
    %v1269 = vunpack.c.l.b16 %v249
    %v1270 = vunpack.c.h.b16 %v249
    %v1271 = vunpack.c.l.b16 %v250
    %v1272 = vunpack.c.h.b16 %v250
    %v1273 = vunpack.c.l.b16 %v251
    %v1274 = vunpack.c.h.b16 %v251
    %v1275 = vunpack.c.l.b16 %v252
    %v1276 = vunpack.c.h.b16 %v252
    %v1277 = vunpack.c.l.b16 %v253
    %v1278 = vunpack.c.h.b16 %v253
    %v1279 = vunpack.c.l.b16 %v254
    %v1280 = vunpack.c.h.b16 %v254
    %v1281 = vunpack.c.l.b16 %v255
    %v1282 = vunpack.c.h.b16 %v255
    %v1283 = vunpack.c.l.b16 %v256
    %v1284 = vunpack.c.h.b16 %v256
    %v1285 = vunpack.c.l.b16 %v257
    %v1286 = vunpack.c.h.b16 %v257
    %v1287 = vunpack.c.l.b16 %v258
    %v1288 = vunpack.c.h.b16 %v258
    %v1289 = vunpack.c.l.b16 %v259
    %v1290 = vunpack.c.h.b16 %v259
    %v1291 = vunpack.c.l.b16 %v260
    %v1292 = vunpack.c.h.b16 %v260
    %v1293 = vunpack.c.l.b16 %v261
    %v1294 = vunpack.c.h.b16 %v261
    %v1295 = vunpack.c.l.b16 %v262
    %v1296 = vunpack.c.h.b16 %v262
    %v1297 = vunpack.c.l.b16 %v263
    %v1298 = vunpack.c.h.b16 %v263
    %v1299 = vunpack.c.l.b16 %v264
    %v1300 = vunpack.c.h.b16 %v264
    %v1301 = vunpack.c.l.b16 %v265
    %v1302 = vunpack.c.h.b16 %v265
    %v1303 = vunpack.c.l.b16 %v266
    %v1304 = vunpack.c.h.b16 %v266
    %v1305 = vunpack.c.l.b16 %v267
    %v1306 = vunpack.c.h.b16 %v267
    %v1307 = vunpack.c.l.b16 %v268
    %v1308 = vunpack.c.h.b16 %v268
    %v1309 = vunpack.c.l.b16 %v269
    %v1310 = vunpack.c.h.b16 %v269
    %v1311 = vunpack.c.l.b16 %v270
    %v1312 = vunpack.c.h.b16 %v270
    %v1313 = vunpack.c.l.b16 %v271
    %v1314 = vunpack.c.h.b16 %v271
    %v1315 = vunpack.c.l.b16 %v272
    %v1316 = vunpack.c.h.b16 %v272
    %v1317 = vunpack.c.l.b16 %v273
    %v1318 = vunpack.c.h.b16 %v273
    %v1319 = vunpack.c.l.b16 %v274
    %v1320 = vunpack.c.h.b16 %v274
    %v1321 = vunpack.c.l.b16 %v275
    %v1322 = vunpack.c.h.b16 %v275
    %v1323 = vunpack.c.l.b16 %v276
    %v1324 = vunpack.c.h.b16 %v276
    %v1325 = vunpack.c.l.b16 %v277
    %v1326 = vunpack.c.h.b16 %v277
    %v1327 = vunpack.c.l.b16 %v278
    %v1328 = vunpack.c.h.b16 %v278
    %v1329 = vunpack.c.l.b16 %v279
    %v1330 = vunpack.c.h.b16 %v279
    %v1331 = vunpack.c.l.b16 %v280
    %v1332 = vunpack.c.h.b16 %v280
    %v1333 = vunpack.c.l.b16 %v281
    %v1334 = vunpack.c.h.b16 %v281
    %v1335 = vunpack.c.l.b16 %v282
    %v1336 = vunpack.c.h.b16 %v282
    %v1337 = vunpack.c.l.b16 %v283
    %v1338 = vunpack.c.h.b16 %v283
    %v1339 = vunpack.c.l.b16 %v284
    %v1340 = vunpack.c.h.b16 %v284
    %v1341 = vunpack.c.l.b16 %v285
    %v1342 = vunpack.c.h.b16 %v285
    %v1343 = vunpack.c.l.b16 %v286
    %v1344 = vunpack.c.h.b16 %v286
    %v1345 = vunpack.c.l.b16 %v287
    %v1346 = vunpack.c.h.b16 %v287
    %v1347 = vunpack.c.l.b16 %v288
    %v1348 = vunpack.c.h.b16 %v288
    %v1349 = vunpack.c.l.b16 %v289
    %v1350 = vunpack.c.h.b16 %v289
    %v1351 = vunpack.c.l.b16 %v290
    %v1352 = vunpack.c.h.b16 %v290
    %v1353 = vunpack.c.l.b16 %v291
    %v1354 = vunpack.c.h.b16 %v291
    %v1355 = vunpack.c.l.b16 %v292
    %v1356 = vunpack.c.h.b16 %v292
    %v1357 = vunpack.c.l.b16 %v293
    %v1358 = vunpack.c.h.b16 %v293
    %v1359 = vunpack.c.l.b16 %v294
    %v1360 = vunpack.c.h.b16 %v294
    %v1361 = vunpack.c.l.b16 %v295
    %v1362 = vunpack.c.h.b16 %v295
    %v1363 = vunpack.c.l.b16 %v296
    %v1364 = vunpack.c.h.b16 %v296
    %v1365 = vunpack.c.l.b16 %v297
    %v1366 = vunpack.c.h.b16 %v297
    %v1367 = vunpack.c.l.b16 %v298
    %v1368 = vunpack.c.h.b16 %v298
    %v1369 = vunpack.c.l.b16 %v299
    %v1370 = vunpack.c.h.b16 %v299
    %v1371 = vunpack.c.l.b16 %v300
    %v1372 = vunpack.c.h.b16 %v300
    %v1373 = vunpack.c.l.b16 %v301
    %v1374 = vunpack.c.h.b16 %v301
    %v1375 = vunpack.c.l.b16 %v302
    %v1376 = vunpack.c.h.b16 %v302
    %v1377 = vunpack.c.l.b16 %v303
    %v1378 = vunpack.c.h.b16 %v303
    %v1379 = vunpack.c.l.b16 %v304
    %v1380 = vunpack.c.h.b16 %v304
    %v1381 = vunpack.c.l.b16 %v305
    %v1382 = vunpack.c.h.b16 %v305
    %v1383 = vunpack.c.l.b16 %v306
    %v1384 = vunpack.c.h.b16 %v306
    %v1385 = vunpack.c.l.b16 %v307
    %v1386 = vunpack.c.h.b16 %v307
    %v1387 = vunpack.c.l.b16 %v308
    %v1388 = vunpack.c.h.b16 %v308
    %v1389 = vunpack.c.l.b16 %v309
    %v1390 = vunpack.c.h.b16 %v309
    %v1391 = vunpack.c.l.b16 %v310
    %v1392 = vunpack.c.h.b16 %v310
    %v1393 = vunpack.c.l.b16 %v311
    %v1394 = vunpack.c.h.b16 %v311
    %v1395 = vunpack.c.l.b16 %v312
    %v1396 = vunpack.c.h.b16 %v312
    %v1397 = vunpack.c.l.b16 %v313
    %v1398 = vunpack.c.h.b16 %v313
    %v1399 = vunpack.c.l.b16 %v314
    %v1400 = vunpack.c.h.b16 %v314
    %v1401 = vunpack.c.l.b16 %v315
    %v1402 = vunpack.c.h.b16 %v315
    %v1403 = vunpack.c.l.b16 %v316
    %v1404 = vunpack.c.h.b16 %v316
    %v1405 = vunpack.c.l.b16 %v317
    %v1406 = vunpack.c.h.b16 %v317
    %v1407 = vunpack.c.l.b16 %v318
    %v1408 = vunpack.c.h.b16 %v318
    %v1409 = vunpack.c.l.b16 %v319
    %v1410 = vunpack.c.h.b16 %v319
    %v1411 = vunpack.c.l.b16 %v320
    %v1412 = vunpack.c.h.b16 %v320
    %v1413 = vunpack.c.l.b16 %v321
    %v1414 = vunpack.c.h.b16 %v321
    %v1415 = vunpack.c.l.b16 %v322
    %v1416 = vunpack.c.h.b16 %v322
    %v1417 = vunpack.c.l.b16 %v323
    %v1418 = vunpack.c.h.b16 %v323
    %v1419 = vunpack.c.l.b16 %v324
    %v1420 = vunpack.c.h.b16 %v324
    %v1421 = vunpack.c.l.b16 %v325
    %v1422 = vunpack.c.h.b16 %v325
    %v1423 = vunpack.c.l.b16 %v326
    %v1424 = vunpack.c.h.b16 %v326
    %v1425 = vunpack.c.l.b16 %v327
    %v1426 = vunpack.c.h.b16 %v327
    %v1427 = vunpack.c.l.b16 %v328
    %v1428 = vunpack.c.h.b16 %v328
    %v1429 = vunpack.c.l.b16 %v329
    %v1430 = vunpack.c.h.b16 %v329
    %v1431 = vunpack.c.l.b16 %v330
    %v1432 = vunpack.c.h.b16 %v330
    %v1433 = vunpack.c.l.b16 %v331
    %v1434 = vunpack.c.h.b16 %v331
    %v1435 = vunpack.c.l.b16 %v332
    %v1436 = vunpack.c.h.b16 %v332
    %v1437 = vunpack.c.l.b16 %v333
    %v1438 = vunpack.c.h.b16 %v333
    %v1439 = vunpack.c.l.b16 %v334
    %v1440 = vunpack.c.h.b16 %v334
    %v1441 = vunpack.c.l.b16 %v335
    %v1442 = vunpack.c.h.b16 %v335
    %v1443 = vunpack.c.l.b16 %v336
    %v1444 = vunpack.c.h.b16 %v336
    %v1445 = vunpack.c.l.b16 %v337
    %v1446 = vunpack.c.h.b16 %v337
    %v1447 = vunpack.c.l.b16 %v338
    %v1448 = vunpack.c.h.b16 %v338
    %v1449 = vunpack.c.l.b16 %v339
    %v1450 = vunpack.c.h.b16 %v339
    %v1451 = vunpack.c.l.b16 %v340
    %v1452 = vunpack.c.h.b16 %v340
    %v1453 = vunpack.c.l.b16 %v341
    %v1454 = vunpack.c.h.b16 %v341
    %v1455 = vunpack.c.l.b16 %v342
    %v1456 = vunpack.c.h.b16 %v342
    %v1457 = vunpack.c.l.b16 %v343
    %v1458 = vunpack.c.h.b16 %v343
    %v1459 = vunpack.c.l.b16 %v344
    %v1460 = vunpack.c.h.b16 %v344
    %v1461 = vunpack.c.l.b16 %v345
    %v1462 = vunpack.c.h.b16 %v345
    %v1463 = vunpack.c.l.b16 %v346
    %v1464 = vunpack.c.h.b16 %v346
    %v1465 = vunpack.c.l.b16 %v347
    %v1466 = vunpack.c.h.b16 %v347
    %v1467 = vunpack.c.l.b16 %v348
    %v1468 = vunpack.c.h.b16 %v348
    %v1469 = vunpack.c.l.b16 %v349
    %v1470 = vunpack.c.h.b16 %v349
    %v1471 = vunpack.c.l.b16 %v350
    %v1472 = vunpack.c.h.b16 %v350
    %v1473 = vunpack.c.l.b16 %v351
    %v1474 = vunpack.c.h.b16 %v351
    %v1475 = vunpack.c.l.b16 %v352
    %v1476 = vunpack.c.h.b16 %v352
    %v1477 = vunpack.c.l.b16 %v353
    %v1478 = vunpack.c.h.b16 %v353
    %v1479 = vunpack.c.l.b16 %v354
    %v1480 = vunpack.c.h.b16 %v354
    %v1481 = vunpack.c.l.b16 %v355
    %v1482 = vunpack.c.h.b16 %v355
    %v1483 = vunpack.c.l.b16 %v356
    %v1484 = vunpack.c.h.b16 %v356
    %v1485 = vunpack.c.l.b16 %v357
    %v1486 = vunpack.c.h.b16 %v357
    %v1487 = vunpack.c.l.b16 %v358
    %v1488 = vunpack.c.h.b16 %v358
    %v1489 = vunpack.c.l.b16 %v359
    %v1490 = vunpack.c.h.b16 %v359
    %v1491 = vunpack.c.l.b16 %v360
    %v1492 = vunpack.c.h.b16 %v360
    %v1493 = vunpack.c.l.b16 %v361
    %v1494 = vunpack.c.h.b16 %v361
    %v1495 = vunpack.c.l.b16 %v362
    %v1496 = vunpack.c.h.b16 %v362
    %v1497 = vunpack.c.l.b16 %v363
    %v1498 = vunpack.c.h.b16 %v363
    %v1499 = vunpack.c.l.b16 %v364
    %v1500 = vunpack.c.h.b16 %v364
    %v1501 = vunpack.c.l.b16 %v365
    %v1502 = vunpack.c.h.b16 %v365
    %v1503 = vunpack.c.l.b16 %v366
    %v1504 = vunpack.c.h.b16 %v366
    %v1505 = vunpack.c.l.b16 %v367
    %v1506 = vunpack.c.h.b16 %v367
    %v1507 = vunpack.c.l.b16 %v368
    %v1508 = vunpack.c.h.b16 %v368
    %v1509 = vunpack.c.l.b16 %v369
    %v1510 = vunpack.c.h.b16 %v369
    %v1511 = vunpack.c.l.b16 %v370
    %v1512 = vunpack.c.h.b16 %v370
    %v1513 = vunpack.c.l.b16 %v371
    %v1514 = vunpack.c.h.b16 %v371
    %v1515 = vunpack.c.l.b16 %v372
    %v1516 = vunpack.c.h.b16 %v372
    %v1517 = vunpack.c.l.b16 %v373
    %v1518 = vunpack.c.h.b16 %v373
    %v1519 = vunpack.c.l.b16 %v374
    %v1520 = vunpack.c.h.b16 %v374
    %v1521 = vunpack.c.l.b16 %v375
    %v1522 = vunpack.c.h.b16 %v375
    %v1523 = vunpack.c.l.b16 %v376
    %v1524 = vunpack.c.h.b16 %v376
    %v1525 = vunpack.c.l.b16 %v377
    %v1526 = vunpack.c.h.b16 %v377
    %v1527 = vunpack.c.l.b16 %v378
    %v1528 = vunpack.c.h.b16 %v378
    %v1529 = vunpack.c.l.b16 %v379
    %v1530 = vunpack.c.h.b16 %v379
    %v1531 = vunpack.c.l.b16 %v380
    %v1532 = vunpack.c.h.b16 %v380
    %v1533 = vunpack.c.l.b16 %v381
    %v1534 = vunpack.c.h.b16 %v381
    %v1535 = vunpack.c.l.b16 %v382
    %v1536 = vunpack.c.h.b16 %v382
    %v1537 = vunpack.c.l.b16 %v383
    %v1538 = vunpack.c.h.b16 %v383
    %v1539 = vunpack.c.l.b16 %v384
    %v1540 = vunpack.c.h.b16 %v384
    %v1541 = vunpack.c.l.b16 %v385
    %v1542 = vunpack.c.h.b16 %v385
    %v1543 = vunpack.c.l.b16 %v386
    %v1544 = vunpack.c.h.b16 %v386
    %v1545 = vunpack.c.l.b16 %v387
    %v1546 = vunpack.c.h.b16 %v387
    %v1547 = vunpack.c.l.b16 %v388
    %v1548 = vunpack.c.h.b16 %v388
    %v1549 = vunpack.c.l.b16 %v389
    %v1550 = vunpack.c.h.b16 %v389
    %v1551 = vunpack.c.l.b16 %v390
    %v1552 = vunpack.c.h.b16 %v390
    %v1553 = vunpack.c.l.b16 %v391
    %v1554 = vunpack.c.h.b16 %v391
    %v1555 = vunpack.c.l.b16 %v392
    %v1556 = vunpack.c.h.b16 %v392
    %v1557 = vunpack.c.l.b16 %v393
    %v1558 = vunpack.c.h.b16 %v393
    %v1559 = vunpack.c.l.b16 %v394
    %v1560 = vunpack.c.h.b16 %v394
    %v1561 = vunpack.c.l.b16 %v395
    %v1562 = vunpack.c.h.b16 %v395
    %v1563 = vunpack.c.l.b16 %v396
    %v1564 = vunpack.c.h.b16 %v396
    %v1565 = vunpack.c.l.b16 %v397
    %v1566 = vunpack.c.h.b16 %v397
    %v1567 = vunpack.c.l.b16 %v398
    %v1568 = vunpack.c.h.b16 %v398
    %v1569 = vunpack.c.l.b16 %v399
    %v1570 = vunpack.c.h.b16 %v399
    %v1571 = vunpack.c.l.b16 %v400
    %v1572 = vunpack.c.h.b16 %v400
    %v1573 = vunpack.c.l.b16 %v401
    %v1574 = vunpack.c.h.b16 %v401
    %v1575 = vunpack.c.l.b16 %v402
    %v1576 = vunpack.c.h.b16 %v402
    %v1577 = vunpack.c.l.b16 %v403
    %v1578 = vunpack.c.h.b16 %v403
    %v1579 = vunpack.c.l.b16 %v404
    %v1580 = vunpack.c.h.b16 %v404
    %v1581 = vunpack.c.l.b16 %v405
    %v1582 = vunpack.c.h.b16 %v405
    %v1583 = vunpack.c.l.b16 %v406
    %v1584 = vunpack.c.h.b16 %v406
    %v1585 = vunpack.c.l.b16 %v407
    %v1586 = vunpack.c.h.b16 %v407
    %v1587 = vunpack.c.l.b16 %v408
    %v1588 = vunpack.c.h.b16 %v408
    %v1589 = vunpack.c.l.b16 %v409
    %v1590 = vunpack.c.h.b16 %v409
    %v1591 = vunpack.c.l.b16 %v410
    %v1592 = vunpack.c.h.b16 %v410
    %v1593 = vunpack.c.l.b16 %v411
    %v1594 = vunpack.c.h.b16 %v411
    %v1595 = vunpack.c.l.b16 %v412
    %v1596 = vunpack.c.h.b16 %v412
    %v1597 = vunpack.c.l.b16 %v413
    %v1598 = vunpack.c.h.b16 %v413
    %v1599 = vunpack.c.l.b16 %v414
    %v1600 = vunpack.c.h.b16 %v414
    %v1601 = vunpack.c.l.b16 %v415
    %v1602 = vunpack.c.h.b16 %v415
    %v1603 = vunpack.c.l.b16 %v416
    %v1604 = vunpack.c.h.b16 %v416
    %v1605 = vunpack.c.l.b16 %v417
    %v1606 = vunpack.c.h.b16 %v417
    %v1607 = vunpack.c.l.b16 %v418
    %v1608 = vunpack.c.h.b16 %v418
    %v1609 = vunpack.c.l.b16 %v419
    %v1610 = vunpack.c.h.b16 %v419
    %v1611 = vunpack.c.l.b16 %v420
    %v1612 = vunpack.c.h.b16 %v420
    %v1613 = vunpack.c.l.b16 %v421
    %v1614 = vunpack.c.h.b16 %v421
    %v1615 = vunpack.c.l.b16 %v422
    %v1616 = vunpack.c.h.b16 %v422
    %v1617 = vunpack.c.l.b16 %v423
    %v1618 = vunpack.c.h.b16 %v423
    %v1619 = vunpack.c.l.b16 %v424
    %v1620 = vunpack.c.h.b16 %v424
    %v1621 = vunpack.c.l.b16 %v425
    %v1622 = vunpack.c.h.b16 %v425
    %v1623 = vunpack.c.l.b16 %v426
    %v1624 = vunpack.c.h.b16 %v426
    %v1625 = vunpack.c.l.b16 %v427
    %v1626 = vunpack.c.h.b16 %v427
    %v1627 = vunpack.c.l.b16 %v428
    %v1628 = vunpack.c.h.b16 %v428
    %v1629 = vunpack.c.l.b16 %v429
    %v1630 = vunpack.c.h.b16 %v429
    %v1631 = vunpack.c.l.b16 %v430
    %v1632 = vunpack.c.h.b16 %v430
    %v1633 = vunpack.c.l.b16 %v431
    %v1634 = vunpack.c.h.b16 %v431
    %v1635 = vunpack.c.l.b16 %v432
    %v1636 = vunpack.c.h.b16 %v432
    %v1637 = vunpack.c.l.b16 %v433
    %v1638 = vunpack.c.h.b16 %v433
    %v1639 = vunpack.c.l.b16 %v434
    %v1640 = vunpack.c.h.b16 %v434
    %v1641 = vunpack.c.l.b16 %v435
    %v1642 = vunpack.c.h.b16 %v435
    %v1643 = vunpack.c.l.b16 %v436
    %v1644 = vunpack.c.h.b16 %v436
    %v1645 = vunpack.c.l.b16 %v437
    %v1646 = vunpack.c.h.b16 %v437
    %v1647 = vunpack.c.l.b16 %v438
    %v1648 = vunpack.c.h.b16 %v438
    %v1649 = vunpack.c.l.b16 %v439
    %v1650 = vunpack.c.h.b16 %v439
    %v1651 = vunpack.c.l.b16 %v440
    %v1652 = vunpack.c.h.b16 %v440
    %v1653 = vunpack.c.l.b16 %v441
    %v1654 = vunpack.c.h.b16 %v441
    %v1655 = vunpack.c.l.b16 %v442
    %v1656 = vunpack.c.h.b16 %v442
    %v1657 = vunpack.c.l.b16 %v443
    %v1658 = vunpack.c.h.b16 %v443
    %v1659 = vunpack.c.l.b16 %v444
    %v1660 = vunpack.c.h.b16 %v444
    %v1661 = vunpack.c.l.b16 %v445
    %v1662 = vunpack.c.h.b16 %v445
    %v1663 = vunpack.c.l.b16 %v446
    %v1664 = vunpack.c.h.b16 %v446
    %v1665 = vunpack.c.l.b16 %v447
    %v1666 = vunpack.c.h.b16 %v447
    %v1667 = vunpack.c.l.b16 %v448
    %v1668 = vunpack.c.h.b16 %v448
    %v1669 = vunpack.c.l.b16 %v449
    %v1670 = vunpack.c.h.b16 %v449
    %v1671 = vunpack.c.l.b16 %v450
    %v1672 = vunpack.c.h.b16 %v450
    %v1673 = vunpack.c.l.b16 %v451
    %v1674 = vunpack.c.h.b16 %v451
    %v1675 = vunpack.c.l.b16 %v452
    %v1676 = vunpack.c.h.b16 %v452
    %v1677 = vpack.c.b16 %v917, %v909
    %v1678 = vpack.c.b16 %v918, %v910
    %v1679 = vpack.c.b16 %v919, %v911
    %v1680 = vpack.c.b16 %v920, %v912
    %v1681 = vpack.c.b16 %v921, %v913
    %v1682 = vpack.c.b16 %v922, %v914
    %v1683 = vpack.c.b16 %v923, %v915
    %v1684 = vpack.c.b16 %v924, %v916
    %v1685 = vpack.c.b16 %v933, %v925
    %v1686 = vpack.c.b16 %v934, %v926
    %v1687 = vpack.c.b16 %v935, %v927
    %v1688 = vpack.c.b16 %v936, %v928
    %v1689 = vpack.c.b16 %v937, %v929
    %v1690 = vpack.c.b16 %v938, %v930
    %v1691 = vpack.c.b16 %v939, %v931
    %v1692 = vpack.c.b16 %v940, %v932
    %v1693 = vpack.c.b16 %v949, %v941
    %v1694 = vpack.c.b16 %v950, %v942
    %v1695 = vpack.c.b16 %v951, %v943
    %v1696 = vpack.c.b16 %v952, %v944
    %v1697 = vpack.c.b16 %v953, %v945
    %v1698 = vpack.c.b16 %v954, %v946
    %v1699 = vpack.c.b16 %v955, %v947
    %v1700 = vpack.c.b16 %v956, %v948
    %v1701 = vpack.c.b16 %v965, %v957
    %v1702 = vpack.c.b16 %v966, %v958
    %v1703 = vpack.c.b16 %v967, %v959
    %v1704 = vpack.c.b16 %v968, %v960
    %v1705 = vpack.c.b16 %v969, %v961
    %v1706 = vpack.c.b16 %v970, %v962
    %v1707 = vpack.c.b16 %v971, %v963
    %v1708 = vpack.c.b16 %v972, %v964
    %v1709 = vpack.c.b16 %v981, %v973
    %v1710 = vpack.c.b16 %v982, %v974
    %v1711 = vpack.c.b16 %v983, %v975
    %v1712 = vpack.c.b16 %v984, %v976
    %v1713 = vpack.c.b16 %v985, %v977
    %v1714 = vpack.c.b16 %v986, %v978
    %v1715 = vpack.c.b16 %v987, %v979
    %v1716 = vpack.c.b16 %v988, %v980
    %v1717 = vpack.c.b16 %v997, %v989
    %v1718 = vpack.c.b16 %v998, %v990
    %v1719 = vpack.c.b16 %v999, %v991
    %v1720 = vpack.c.b16 %v1000, %v992
    %v1721 = vpack.c.b16 %v1001, %v993
    %v1722 = vpack.c.b16 %v1002, %v994
    %v1723 = vpack.c.b16 %v1003, %v995
    %v1724 = vpack.c.b16 %v1004, %v996
    %v1725 = vpack.c.b16 %v1013, %v1005
    %v1726 = vpack.c.b16 %v1014, %v1006
    %v1727 = vpack.c.b16 %v1015, %v1007
    %v1728 = vpack.c.b16 %v1016, %v1008
    %v1729 = vpack.c.b16 %v1017, %v1009
    %v1730 = vpack.c.b16 %v1018, %v1010
    %v1731 = vpack.c.b16 %v1019, %v1011
    %v1732 = vpack.c.b16 %v1020, %v1012
    %v1733 = vpack.c.b16 %v1029, %v1021
    %v1734 = vpack.c.b16 %v1030, %v1022
    %v1735 = vpack.c.b16 %v1031, %v1023
    %v1736 = vpack.c.b16 %v1032, %v1024
    %v1737 = vpack.c.b16 %v1033, %v1025
    %v1738 = vpack.c.b16 %v1034, %v1026
    %v1739 = vpack.c.b16 %v1035, %v1027
    %v1740 = vpack.c.b16 %v1036, %v1028
    %v1741 = vpack.c.b16 %v1045, %v1037
    %v1742 = vpack.c.b16 %v1046, %v1038
    %v1743 = vpack.c.b16 %v1047, %v1039
    %v1744 = vpack.c.b16 %v1048, %v1040
    %v1745 = vpack.c.b16 %v1049, %v1041
    %v1746 = vpack.c.b16 %v1050, %v1042
    %v1747 = vpack.c.b16 %v1051, %v1043
    %v1748 = vpack.c.b16 %v1052, %v1044
    %v1749 = vpack.c.b16 %v1061, %v1053
    %v1750 = vpack.c.b16 %v1062, %v1054
    %v1751 = vpack.c.b16 %v1063, %v1055
    %v1752 = vpack.c.b16 %v1064, %v1056
    %v1753 = vpack.c.b16 %v1065, %v1057
    %v1754 = vpack.c.b16 %v1066, %v1058
    %v1755 = vpack.c.b16 %v1067, %v1059
    %v1756 = vpack.c.b16 %v1068, %v1060
    %v1757 = vpack.c.b16 %v1077, %v1069
    %v1758 = vpack.c.b16 %v1078, %v1070
    %v1759 = vpack.c.b16 %v1079, %v1071
    %v1760 = vpack.c.b16 %v1080, %v1072
    %v1761 = vpack.c.b16 %v1081, %v1073
    %v1762 = vpack.c.b16 %v1082, %v1074
    %v1763 = vpack.c.b16 %v1083, %v1075
    %v1764 = vpack.c.b16 %v1084, %v1076
    %v1765 = vpack.c.b16 %v1093, %v1085
    %v1766 = vpack.c.b16 %v1094, %v1086
    %v1767 = vpack.c.b16 %v1095, %v1087
    %v1768 = vpack.c.b16 %v1096, %v1088
    %v1769 = vpack.c.b16 %v1097, %v1089
    %v1770 = vpack.c.b16 %v1098, %v1090
    %v1771 = vpack.c.b16 %v1099, %v1091
    %v1772 = vpack.c.b16 %v1100, %v1092
    %v1773 = vpack.c.b16 %v1109, %v1101
    %v1774 = vpack.c.b16 %v1110, %v1102
    %v1775 = vpack.c.b16 %v1111, %v1103
    %v1776 = vpack.c.b16 %v1112, %v1104
    %v1777 = vpack.c.b16 %v1113, %v1105
    %v1778 = vpack.c.b16 %v1114, %v1106
    %v1779 = vpack.c.b16 %v1115, %v1107
    %v1780 = vpack.c.b16 %v1116, %v1108
    %v1781 = vpack.c.b16 %v1125, %v1117
    %v1782 = vpack.c.b16 %v1126, %v1118
    %v1783 = vpack.c.b16 %v1127, %v1119
    %v1784 = vpack.c.b16 %v1128, %v1120
    %v1785 = vpack.c.b16 %v1129, %v1121
    %v1786 = vpack.c.b16 %v1130, %v1122
    %v1787 = vpack.c.b16 %v1131, %v1123
    %v1788 = vpack.c.b16 %v1132, %v1124
    %v1789 = vpack.c.b16 %v1141, %v1133
    %v1790 = vpack.c.b16 %v1142, %v1134
    %v1791 = vpack.c.b16 %v1143, %v1135
    %v1792 = vpack.c.b16 %v1144, %v1136
    %v1793 = vpack.c.b16 %v1145, %v1137
    %v1794 = vpack.c.b16 %v1146, %v1138
    %v1795 = vpack.c.b16 %v1147, %v1139
    %v1796 = vpack.c.b16 %v1148, %v1140
    %v1797 = vpack.c.b16 %v1157, %v1149
    %v1798 = vpack.c.b16 %v1158, %v1150
    %v1799 = vpack.c.b16 %v1159, %v1151
    %v1800 = vpack.c.b16 %v1160, %v1152
    %v1801 = vpack.c.b16 %v1161, %v1153
    %v1802 = vpack.c.b16 %v1162, %v1154
    %v1803 = vpack.c.b16 %v1163, %v1155
    %v1804 = vpack.c.b16 %v1164, %v1156
    %v1805 = vpack.c.b16 %v1173, %v1165
    %v1806 = vpack.c.b16 %v1174, %v1166
    %v1807 = vpack.c.b16 %v1175, %v1167
    %v1808 = vpack.c.b16 %v1176, %v1168
    %v1809 = vpack.c.b16 %v1177, %v1169
    %v1810 = vpack.c.b16 %v1178, %v1170
    %v1811 = vpack.c.b16 %v1179, %v1171
    %v1812 = vpack.c.b16 %v1180, %v1172
    %v1813 = vpack.c.b16 %v1189, %v1181
    %v1814 = vpack.c.b16 %v1190, %v1182
    %v1815 = vpack.c.b16 %v1191, %v1183
    %v1816 = vpack.c.b16 %v1192, %v1184
    %v1817 = vpack.c.b16 %v1193, %v1185
    %v1818 = vpack.c.b16 %v1194, %v1186
    %v1819 = vpack.c.b16 %v1195, %v1187
    %v1820 = vpack.c.b16 %v1196, %v1188
    %v1821 = vpack.c.b16 %v1205, %v1197
    %v1822 = vpack.c.b16 %v1206, %v1198
    %v1823 = vpack.c.b16 %v1207, %v1199
    %v1824 = vpack.c.b16 %v1208, %v1200
    %v1825 = vpack.c.b16 %v1209, %v1201
    %v1826 = vpack.c.b16 %v1210, %v1202
    %v1827 = vpack.c.b16 %v1211, %v1203
    %v1828 = vpack.c.b16 %v1212, %v1204
    %v1829 = vpack.c.b16 %v1221, %v1213
    %v1830 = vpack.c.b16 %v1222, %v1214
    %v1831 = vpack.c.b16 %v1223, %v1215
    %v1832 = vpack.c.b16 %v1224, %v1216
    %v1833 = vpack.c.b16 %v1225, %v1217
    %v1834 = vpack.c.b16 %v1226, %v1218
    %v1835 = vpack.c.b16 %v1227, %v1219
    %v1836 = vpack.c.b16 %v1228, %v1220
    %v1837 = vpack.c.b16 %v1237, %v1229
    %v1838 = vpack.c.b16 %v1238, %v1230
    %v1839 = vpack.c.b16 %v1239, %v1231
    %v1840 = vpack.c.b16 %v1240, %v1232
    %v1841 = vpack.c.b16 %v1241, %v1233
    %v1842 = vpack.c.b16 %v1242, %v1234
    %v1843 = vpack.c.b16 %v1243, %v1235
    %v1844 = vpack.c.b16 %v1244, %v1236
    %v1845 = vpack.c.b16 %v1253, %v1245
    %v1846 = vpack.c.b16 %v1254, %v1246
    %v1847 = vpack.c.b16 %v1255, %v1247
    %v1848 = vpack.c.b16 %v1256, %v1248
    %v1849 = vpack.c.b16 %v1257, %v1249
    %v1850 = vpack.c.b16 %v1258, %v1250
    %v1851 = vpack.c.b16 %v1259, %v1251
    %v1852 = vpack.c.b16 %v1260, %v1252
    %v1853 = vpack.c.b16 %v1269, %v1261
    %v1854 = vpack.c.b16 %v1270, %v1262
    %v1855 = vpack.c.b16 %v1271, %v1263
    %v1856 = vpack.c.b16 %v1272, %v1264
    %v1857 = vpack.c.b16 %v1273, %v1265
    %v1858 = vpack.c.b16 %v1274, %v1266
    %v1859 = vpack.c.b16 %v1275, %v1267
    %v1860 = vpack.c.b16 %v1276, %v1268
    %v1861 = vpack.c.b16 %v1285, %v1277
    %v1862 = vpack.c.b16 %v1286, %v1278
    %v1863 = vpack.c.b16 %v1287, %v1279
    %v1864 = vpack.c.b16 %v1288, %v1280
    %v1865 = vpack.c.b16 %v1289, %v1281
    %v1866 = vpack.c.b16 %v1290, %v1282
    %v1867 = vpack.c.b16 %v1291, %v1283
    %v1868 = vpack.c.b16 %v1292, %v1284
    %v1869 = vpack.c.b16 %v1301, %v1293
    %v1870 = vpack.c.b16 %v1302, %v1294
    %v1871 = vpack.c.b16 %v1303, %v1295
    %v1872 = vpack.c.b16 %v1304, %v1296
    %v1873 = vpack.c.b16 %v1305, %v1297
    %v1874 = vpack.c.b16 %v1306, %v1298
    %v1875 = vpack.c.b16 %v1307, %v1299
    %v1876 = vpack.c.b16 %v1308, %v1300
    %v1877 = vpack.c.b16 %v1317, %v1309
    %v1878 = vpack.c.b16 %v1318, %v1310
    %v1879 = vpack.c.b16 %v1319, %v1311
    %v1880 = vpack.c.b16 %v1320, %v1312
    %v1881 = vpack.c.b16 %v1321, %v1313
    %v1882 = vpack.c.b16 %v1322, %v1314
    %v1883 = vpack.c.b16 %v1323, %v1315
    %v1884 = vpack.c.b16 %v1324, %v1316
    %v1885 = vpack.c.b16 %v1333, %v1325
    %v1886 = vpack.c.b16 %v1334, %v1326
    %v1887 = vpack.c.b16 %v1335, %v1327
    %v1888 = vpack.c.b16 %v1336, %v1328
    %v1889 = vpack.c.b16 %v1337, %v1329
    %v1890 = vpack.c.b16 %v1338, %v1330
    %v1891 = vpack.c.b16 %v1339, %v1331
    %v1892 = vpack.c.b16 %v1340, %v1332
    %v1893 = vpack.c.b16 %v1349, %v1341
    %v1894 = vpack.c.b16 %v1350, %v1342
    %v1895 = vpack.c.b16 %v1351, %v1343
    %v1896 = vpack.c.b16 %v1352, %v1344
    %v1897 = vpack.c.b16 %v1353, %v1345
    %v1898 = vpack.c.b16 %v1354, %v1346
    %v1899 = vpack.c.b16 %v1355, %v1347
    %v1900 = vpack.c.b16 %v1356, %v1348
    %v1901 = vpack.c.b16 %v1365, %v1357
    %v1902 = vpack.c.b16 %v1366, %v1358
    %v1903 = vpack.c.b16 %v1367, %v1359
    %v1904 = vpack.c.b16 %v1368, %v1360
    %v1905 = vpack.c.b16 %v1369, %v1361
    %v1906 = vpack.c.b16 %v1370, %v1362
    %v1907 = vpack.c.b16 %v1371, %v1363
    %v1908 = vpack.c.b16 %v1372, %v1364
    %v1909 = vpack.c.b16 %v1381, %v1373
    %v1910 = vpack.c.b16 %v1382, %v1374
    %v1911 = vpack.c.b16 %v1383, %v1375
    %v1912 = vpack.c.b16 %v1384, %v1376
    %v1913 = vpack.c.b16 %v1385, %v1377
    %v1914 = vpack.c.b16 %v1386, %v1378
    %v1915 = vpack.c.b16 %v1387, %v1379
    %v1916 = vpack.c.b16 %v1388, %v1380
    %v1917 = vpack.c.b16 %v1397, %v1389
    %v1918 = vpack.c.b16 %v1398, %v1390
    %v1919 = vpack.c.b16 %v1399, %v1391
    %v1920 = vpack.c.b16 %v1400, %v1392
    %v1921 = vpack.c.b16 %v1401, %v1393
    %v1922 = vpack.c.b16 %v1402, %v1394
    %v1923 = vpack.c.b16 %v1403, %v1395
    %v1924 = vpack.c.b16 %v1404, %v1396
    %v1925 = vpack.c.b16 %v1413, %v1405
    %v1926 = vpack.c.b16 %v1414, %v1406
    %v1927 = vpack.c.b16 %v1415, %v1407
    %v1928 = vpack.c.b16 %v1416, %v1408
    %v1929 = vpack.c.b16 %v1417, %v1409
    %v1930 = vpack.c.b16 %v1418, %v1410
    %v1931 = vpack.c.b16 %v1419, %v1411
    %v1932 = vpack.c.b16 %v1420, %v1412
    %v1933 = vpack.c.b16 %v1429, %v1421
    %v1934 = vpack.c.b16 %v1430, %v1422
    %v1935 = vpack.c.b16 %v1431, %v1423
    %v1936 = vpack.c.b16 %v1432, %v1424
    %v1937 = vpack.c.b16 %v1433, %v1425
    %v1938 = vpack.c.b16 %v1434, %v1426
    %v1939 = vpack.c.b16 %v1435, %v1427
    %v1940 = vpack.c.b16 %v1436, %v1428
    %v1941 = vpack.c.b16 %v1445, %v1437
    %v1942 = vpack.c.b16 %v1446, %v1438
    %v1943 = vpack.c.b16 %v1447, %v1439
    %v1944 = vpack.c.b16 %v1448, %v1440
    %v1945 = vpack.c.b16 %v1449, %v1441
    %v1946 = vpack.c.b16 %v1450, %v1442
    %v1947 = vpack.c.b16 %v1451, %v1443
    %v1948 = vpack.c.b16 %v1452, %v1444
    %v1949 = vpack.c.b16 %v1461, %v1453
    %v1950 = vpack.c.b16 %v1462, %v1454
    %v1951 = vpack.c.b16 %v1463, %v1455
    %v1952 = vpack.c.b16 %v1464, %v1456
    %v1953 = vpack.c.b16 %v1465, %v1457
    %v1954 = vpack.c.b16 %v1466, %v1458
    %v1955 = vpack.c.b16 %v1467, %v1459
    %v1956 = vpack.c.b16 %v1468, %v1460
    %v1957 = vpack.c.b16 %v1477, %v1469
    %v1958 = vpack.c.b16 %v1478, %v1470
    %v1959 = vpack.c.b16 %v1479, %v1471
    %v1960 = vpack.c.b16 %v1480, %v1472
    %v1961 = vpack.c.b16 %v1481, %v1473
    %v1962 = vpack.c.b16 %v1482, %v1474
    %v1963 = vpack.c.b16 %v1483, %v1475
    %v1964 = vpack.c.b16 %v1484, %v1476
    %v1965 = vpack.c.b16 %v1493, %v1485
    %v1966 = vpack.c.b16 %v1494, %v1486
    %v1967 = vpack.c.b16 %v1495, %v1487
    %v1968 = vpack.c.b16 %v1496, %v1488
    %v1969 = vpack.c.b16 %v1497, %v1489
    %v1970 = vpack.c.b16 %v1498, %v1490
    %v1971 = vpack.c.b16 %v1499, %v1491
    %v1972 = vpack.c.b16 %v1500, %v1492
    %v1973 = vpack.c.b16 %v1509, %v1501
    %v1974 = vpack.c.b16 %v1510, %v1502
    %v1975 = vpack.c.b16 %v1511, %v1503
    %v1976 = vpack.c.b16 %v1512, %v1504
    %v1977 = vpack.c.b16 %v1513, %v1505
    %v1978 = vpack.c.b16 %v1514, %v1506
    %v1979 = vpack.c.b16 %v1515, %v1507
    %v1980 = vpack.c.b16 %v1516, %v1508
    %v1981 = vpack.c.b16 %v1525, %v1517
    %v1982 = vpack.c.b16 %v1526, %v1518
    %v1983 = vpack.c.b16 %v1527, %v1519
    %v1984 = vpack.c.b16 %v1528, %v1520
    %v1985 = vpack.c.b16 %v1529, %v1521
    %v1986 = vpack.c.b16 %v1530, %v1522
    %v1987 = vpack.c.b16 %v1531, %v1523
    %v1988 = vpack.c.b16 %v1532, %v1524
    %v1989 = vpack.c.b16 %v1541, %v1533
    %v1990 = vpack.c.b16 %v1542, %v1534
    %v1991 = vpack.c.b16 %v1543, %v1535
    %v1992 = vpack.c.b16 %v1544, %v1536
    %v1993 = vpack.c.b16 %v1545, %v1537
    %v1994 = vpack.c.b16 %v1546, %v1538
    %v1995 = vpack.c.b16 %v1547, %v1539
    %v1996 = vpack.c.b16 %v1548, %v1540
    %v1997 = vpack.c.b16 %v1557, %v1549
    %v1998 = vpack.c.b16 %v1558, %v1550
    %v1999 = vpack.c.b16 %v1559, %v1551
    %v2000 = vpack.c.b16 %v1560, %v1552
    %v2001 = vpack.c.b16 %v1561, %v1553
    %v2002 = vpack.c.b16 %v1562, %v1554
    %v2003 = vpack.c.b16 %v1563, %v1555
    %v2004 = vpack.c.b16 %v1564, %v1556
    %v2005 = vpack.c.b16 %v1573, %v1565
    %v2006 = vpack.c.b16 %v1574, %v1566
    %v2007 = vpack.c.b16 %v1575, %v1567
    %v2008 = vpack.c.b16 %v1576, %v1568
    %v2009 = vpack.c.b16 %v1577, %v1569
    %v2010 = vpack.c.b16 %v1578, %v1570
    %v2011 = vpack.c.b16 %v1579, %v1571
    %v2012 = vpack.c.b16 %v1580, %v1572
    %v2013 = vpack.c.b16 %v1589, %v1581
    %v2014 = vpack.c.b16 %v1590, %v1582
    %v2015 = vpack.c.b16 %v1591, %v1583
    %v2016 = vpack.c.b16 %v1592, %v1584
    %v2017 = vpack.c.b16 %v1593, %v1585
    %v2018 = vpack.c.b16 %v1594, %v1586
    %v2019 = vpack.c.b16 %v1595, %v1587
    %v2020 = vpack.c.b16 %v1596, %v1588
    %v2021 = vpack.c.b16 %v1605, %v1597
    %v2022 = vpack.c.b16 %v1606, %v1598
    %v2023 = vpack.c.b16 %v1607, %v1599
    %v2024 = vpack.c.b16 %v1608, %v1600
    %v2025 = vpack.c.b16 %v1609, %v1601
    %v2026 = vpack.c.b16 %v1610, %v1602
    %v2027 = vpack.c.b16 %v1611, %v1603
    %v2028 = vpack.c.b16 %v1612, %v1604
    %v2029 = vpack.c.b16 %v1621, %v1613
    %v2030 = vpack.c.b16 %v1622, %v1614
    %v2031 = vpack.c.b16 %v1623, %v1615
    %v2032 = vpack.c.b16 %v1624, %v1616
    %v2033 = vpack.c.b16 %v1625, %v1617
    %v2034 = vpack.c.b16 %v1626, %v1618
    %v2035 = vpack.c.b16 %v1627, %v1619
    %v2036 = vpack.c.b16 %v1628, %v1620
    %v2037 = vpack.c.b16 %v1637, %v1629
    %v2038 = vpack.c.b16 %v1638, %v1630
    %v2039 = vpack.c.b16 %v1639, %v1631
    %v2040 = vpack.c.b16 %v1640, %v1632
    %v2041 = vpack.c.b16 %v1641, %v1633
    %v2042 = vpack.c.b16 %v1642, %v1634
    %v2043 = vpack.c.b16 %v1643, %v1635
    %v2044 = vpack.c.b16 %v1644, %v1636
    %v2045 = vpack.c.b16 %v1653, %v1645
    %v2046 = vpack.c.b16 %v1654, %v1646
    %v2047 = vpack.c.b16 %v1655, %v1647
    %v2048 = vpack.c.b16 %v1656, %v1648
    %v2049 = vpack.c.b16 %v1657, %v1649
    %v2050 = vpack.c.b16 %v1658, %v1650
    %v2051 = vpack.c.b16 %v1659, %v1651
    %v2052 = vpack.c.b16 %v1660, %v1652
    %v2053 = vpack.c.b16 %v1669, %v1661
    %v2054 = vpack.c.b16 %v1670, %v1662
    %v2055 = vpack.c.b16 %v1671, %v1663
    %v2056 = vpack.c.b16 %v1672, %v1664
    %v2057 = vpack.c.b16 %v1673, %v1665
    %v2058 = vpack.c.b16 %v1674, %v1666
    %v2059 = vpack.c.b16 %v1675, %v1667
    %v2060 = vpack.c.b16 %v1676, %v1668
    %2445 = vmatprep.subr.bf16.mxu0 %v1678
    %2446 = vmatpush1.bf16.msra.mxu0 %v1677
    %2447 = vmatprep.subr.bf16.mxu0 %v1686
    %2448 = vmatpush1.bf16.msra.mxu0 %v1685
    %2449 = vmatprep.subr.bf16.mxu0 %v1694
    %2450 = vmatpush1.bf16.msra.mxu0 %v1693
    %2451 = vmatprep.subr.bf16.mxu0 %v1702
    %2452 = vmatpush1.bf16.msra.mxu0 %v1701
    %2453 = vmatprep.subr.bf16.mxu0 %v1710
    %2454 = vmatpush1.bf16.msra.mxu0 %v1709
    %2455 = vmatprep.subr.bf16.mxu0 %v1718
    %2456 = vmatpush1.bf16.msra.mxu0 %v1717
    %2457 = vmatprep.subr.bf16.mxu0 %v1726
    %2458 = vmatpush1.bf16.msra.mxu0 %v1725
    %2459 = vmatprep.subr.bf16.mxu0 %v1734
    %2460 = vmatpush1.bf16.msra.mxu0 %v1733
    %2461 = vmatprep.subr.bf16.mxu0 %v1742
    %2462 = vmatpush1.bf16.msra.mxu0 %v1741
    %2463 = vmatprep.subr.bf16.mxu0 %v1750
    %2464 = vmatpush1.bf16.msra.mxu0 %v1749
    %2465 = vmatprep.subr.bf16.mxu0 %v1758
    %2466 = vmatpush1.bf16.msra.mxu0 %v1757
    %2467 = vmatprep.subr.bf16.mxu0 %v1766
    %2468 = vmatpush1.bf16.msra.mxu0 %v1765
    %2469 = vmatprep.subr.bf16.mxu0 %v1774
    %2470 = vmatpush1.bf16.msra.mxu0 %v1773
    %2471 = vmatprep.subr.bf16.mxu0 %v1782
    %2472 = vmatpush1.bf16.msra.mxu0 %v1781
    %2473 = vmatprep.subr.bf16.mxu0 %v1790
    %2474 = vmatpush1.bf16.msra.mxu0 %v1789
    %2475 = vmatprep.subr.bf16.mxu0 %v1798
    %2476 = vmatpush1.bf16.msra.mxu0 %v1797
    %2477 = vmatprep.mubr.bf16.mxu0 %v472
    %2478 = vmatmul.mubr.bf16.gmra.mrb[0].mxu0 %v471
    %v2479 = vpop.f32.mrb[0].mxu0
    %v2480 = vadd.f32 %v488, %v2479
    %v2481 = vpop.f32.mrb[0].mxu0
    %v2482 = vadd.f32 %v492, %v2481
    %v2483 = vpop.f32.mrb[0].mxu0
    %v2484 = vadd.f32 %v488, %v2483
    %v2485 = vpop.f32.mrb[0].mxu0
    %v2486 = vadd.f32 %v492, %v2485
    %2487 = vmatprep.mubr.bf16.mxu0 %v478
    %2488 = vmatmul.mubr.bf16.gmra.mrb[0].mxu0 %v477
    %v2489 = vpop.f32.mrb[0].mxu0
    %v2490 = vadd.f32 %v488, %v2489
    %v2491 = vpop.f32.mrb[0].mxu0
    %v2492 = vadd.f32 %v492, %v2491
    %v2493 = vpop.f32.mrb[0].mxu0
    %v2494 = vpop.f32.mrb[0].mxu0
    %2495 = vdwg.mxu0
    %2496 = vmatprep.subr.bf16.mxu0 %v1806
    %2497 = vmatpush1.bf16.msra.mxu0 %v1805
    %2498 = vmatprep.subr.bf16.mxu0 %v1814
    %2499 = vmatpush1.bf16.msra.mxu0 %v1813
    %2500 = vmatprep.subr.bf16.mxu0 %v1822
    %2501 = vmatpush1.bf16.msra.mxu0 %v1821
    %2502 = vmatprep.subr.bf16.mxu0 %v1830
    %2503 = vmatpush1.bf16.msra.mxu0 %v1829
    %2504 = vmatprep.subr.bf16.mxu0 %v1838
    %2505 = vmatpush1.bf16.msra.mxu0 %v1837
    %2506 = vmatprep.subr.bf16.mxu0 %v1846
    %2507 = vmatpush1.bf16.msra.mxu0 %v1845
    %2508 = vmatprep.subr.bf16.mxu0 %v1854
    %2509 = vmatpush1.bf16.msra.mxu0 %v1853
    %2510 = vmatprep.subr.bf16.mxu0 %v1862
    %2511 = vmatpush1.bf16.msra.mxu0 %v1861
    %2512 = vmatprep.subr.bf16.mxu0 %v1870
    %2513 = vmatpush1.bf16.msra.mxu0 %v1869
    %2514 = vmatprep.subr.bf16.mxu0 %v1878
    %2515 = vmatpush1.bf16.msra.mxu0 %v1877
    %2516 = vmatprep.subr.bf16.mxu0 %v1886
    %2517 = vmatpush1.bf16.msra.mxu0 %v1885
    %2518 = vmatprep.subr.bf16.mxu0 %v1894
    %2519 = vmatpush1.bf16.msra.mxu0 %v1893
    %2520 = vmatprep.subr.bf16.mxu0 %v1902
    %2521 = vmatpush1.bf16.msra.mxu0 %v1901
    %2522 = vmatprep.subr.bf16.mxu0 %v1910
    %2523 = vmatpush1.bf16.msra.mxu0 %v1909
    %2524 = vmatprep.subr.bf16.mxu0 %v1918
    %2525 = vmatpush1.bf16.msra.mxu0 %v1917
    %2526 = vmatprep.subr.bf16.mxu0 %v1926
    %2527 = vmatpush1.bf16.msra.mxu0 %v1925
    %2528 = vmatprep.mubr.bf16.mxu0 %v474
    %2529 = vmatmul.mubr.bf16.gmra.mrb[0].mxu0 %v473
    %v2530 = vpop.f32.mrb[0].mxu0
    %v2531 = vadd.f32 %v2480, %v2530
    %v2532 = vpop.f32.mrb[0].mxu0
    %v2533 = vadd.f32 %v2482, %v2532
    %v2534 = vpop.f32.mrb[0].mxu0
    %v2535 = vadd.f32 %v2484, %v2534
    %v2536 = vpop.f32.mrb[0].mxu0
    %v2537 = vadd.f32 %v2486, %v2536
    %2538 = vmatprep.mubr.bf16.mxu0 %v480
    %2539 = vmatmul.mubr.bf16.gmra.mrb[0].mxu0 %v479
    %v2540 = vpop.f32.mrb[0].mxu0
    %v2541 = vadd.f32 %v2490, %v2540
    %v2542 = vpop.f32.mrb[0].mxu0
    %v2543 = vadd.f32 %v2492, %v2542
    %v2544 = vpop.f32.mrb[0].mxu0
    %v2545 = vpop.f32.mrb[0].mxu0
    %2546 = vdwg.mxu0
    %2547 = vmatprep.subr.bf16.mxu0 %v1934
    %2548 = vmatpush1.bf16.msra.mxu0 %v1933
    %2549 = vmatprep.subr.bf16.mxu0 %v1942
    %2550 = vmatpush1.bf16.msra.mxu0 %v1941
    %2551 = vmatprep.subr.bf16.mxu0 %v1950
    %2552 = vmatpush1.bf16.msra.mxu0 %v1949
    %2553 = vmatprep.subr.bf16.mxu0 %v1958
    %2554 = vmatpush1.bf16.msra.mxu0 %v1957
    %2555 = vmatprep.subr.bf16.mxu0 %v1966
    %2556 = vmatpush1.bf16.msra.mxu0 %v1965
    %2557 = vmatprep.subr.bf16.mxu0 %v1974
    %2558 = vmatpush1.bf16.msra.mxu0 %v1973
    %2559 = vmatprep.subr.bf16.mxu0 %v1982
    %2560 = vmatpush1.bf16.msra.mxu0 %v1981
    %2561 = vmatprep.subr.bf16.mxu0 %v1990
    %2562 = vmatpush1.bf16.msra.mxu0 %v1989
    %2563 = vmatprep.subr.bf16.mxu0 %v1998
    %2564 = vmatpush1.bf16.msra.mxu0 %v1997
    %2565 = vmatprep.subr.bf16.mxu0 %v2006
    %2566 = vmatpush1.bf16.msra.mxu0 %v2005
    %2567 = vmatprep.subr.bf16.mxu0 %v2014
    %2568 = vmatpush1.bf16.msra.mxu0 %v2013
    %2569 = vmatprep.subr.bf16.mxu0 %v2022
    %2570 = vmatpush1.bf16.msra.mxu0 %v2021
    %2571 = vmatprep.subr.bf16.mxu0 %v2030
    %2572 = vmatpush1.bf16.msra.mxu0 %v2029
    %2573 = vmatprep.subr.bf16.mxu0 %v2038
    %2574 = vmatpush1.bf16.msra.mxu0 %v2037
    %2575 = vmatprep.subr.bf16.mxu0 %v2046
    %2576 = vmatpush1.bf16.msra.mxu0 %v2045
    %2577 = vmatprep.subr.bf16.mxu0 %v2054
    %2578 = vmatpush1.bf16.msra.mxu0 %v2053
    %2579 = vmatprep.mubr.bf16.mxu0 %v476
    %2580 = vmatmul.mubr.bf16.gmra.mrb[0].mxu0 %v475
    %v2581 = vpop.f32.mrb[0].mxu0
    %v2582 = vadd.f32 %v2531, %v2581
    %v2583 = vpop.f32.mrb[0].mxu0
    %v2584 = vadd.f32 %v2533, %v2583
    %v2585 = vpop.f32.mrb[0].mxu0
    %v2586 = vadd.f32 %v2535, %v2585
    %v2587 = vpop.f32.mrb[0].mxu0
    %v2588 = vadd.f32 %v2537, %v2587
    %2589 = vmatprep.mubr.bf16.mxu0 %v482
    %2590 = vmatmul.mubr.bf16.gmra.mrb[0].mxu0 %v481
    %v2591 = vpop.f32.mrb[0].mxu0
    %v2592 = vadd.f32 %v2541, %v2591
    %v2593 = vpop.f32.mrb[0].mxu0
    %v2594 = vadd.f32 %v2543, %v2593
    %v2595 = vpop.f32.mrb[0].mxu0
    %v2596 = vpop.f32.mrb[0].mxu0
    %2597 = vdwg.mxu0
    %2598 = vmatprep.subr.bf16.mxu0 %v1680
    %2599 = vmatpush1.bf16.msra.mxu0 %v1679
    %2600 = vmatprep.subr.bf16.mxu0 %v1688
    %2601 = vmatpush1.bf16.msra.mxu0 %v1687
    %2602 = vmatprep.subr.bf16.mxu0 %v1696
    %2603 = vmatpush1.bf16.msra.mxu0 %v1695
    %2604 = vmatprep.subr.bf16.mxu0 %v1704
    %2605 = vmatpush1.bf16.msra.mxu0 %v1703
    %2606 = vmatprep.subr.bf16.mxu0 %v1712
    %2607 = vmatpush1.bf16.msra.mxu0 %v1711
    %2608 = vmatprep.subr.bf16.mxu0 %v1720
    %2609 = vmatpush1.bf16.msra.mxu0 %v1719
    %2610 = vmatprep.subr.bf16.mxu0 %v1728
    %2611 = vmatpush1.bf16.msra.mxu0 %v1727
    %2612 = vmatprep.subr.bf16.mxu0 %v1736
    %2613 = vmatpush1.bf16.msra.mxu0 %v1735
    %2614 = vmatprep.subr.bf16.mxu0 %v1744
    %2615 = vmatpush1.bf16.msra.mxu0 %v1743
    %2616 = vmatprep.subr.bf16.mxu0 %v1752
    %2617 = vmatpush1.bf16.msra.mxu0 %v1751
    %2618 = vmatprep.subr.bf16.mxu0 %v1760
    %2619 = vmatpush1.bf16.msra.mxu0 %v1759
    %2620 = vmatprep.subr.bf16.mxu0 %v1768
    %2621 = vmatpush1.bf16.msra.mxu0 %v1767
    %2622 = vmatprep.subr.bf16.mxu0 %v1776
    %2623 = vmatpush1.bf16.msra.mxu0 %v1775
    %2624 = vmatprep.subr.bf16.mxu0 %v1784
    %2625 = vmatpush1.bf16.msra.mxu0 %v1783
    %2626 = vmatprep.subr.bf16.mxu0 %v1792
    %2627 = vmatpush1.bf16.msra.mxu0 %v1791
    %2628 = vmatprep.subr.bf16.mxu0 %v1800
    %2629 = vmatpush1.bf16.msra.mxu0 %v1799
    %2630 = vmatprep.mubr.bf16.mxu0 %v472
    %2631 = vmatmul.mubr.bf16.gmra.mrb[0].mxu0 %v471
    %v2632 = vpop.f32.mrb[0].mxu0
    %v2633 = vadd.f32 %v496, %v2632
    %v2634 = vpop.f32.mrb[0].mxu0
    %v2635 = vadd.f32 %v500, %v2634
    %v2636 = vpop.f32.mrb[0].mxu0
    %v2637 = vadd.f32 %v496, %v2636
    %v2638 = vpop.f32.mrb[0].mxu0
    %v2639 = vadd.f32 %v500, %v2638
    %2640 = vmatprep.mubr.bf16.mxu0 %v478
    %2641 = vmatmul.mubr.bf16.gmra.mrb[0].mxu0 %v477
    %v2642 = vpop.f32.mrb[0].mxu0
    %v2643 = vadd.f32 %v496, %v2642
    %v2644 = vpop.f32.mrb[0].mxu0
    %v2645 = vadd.f32 %v500, %v2644
    %v2646 = vpop.f32.mrb[0].mxu0
    %v2647 = vpop.f32.mrb[0].mxu0
    %2648 = vdwg.mxu0
    %2649 = vmatprep.subr.bf16.mxu0 %v1808
    %2650 = vmatpush1.bf16.msra.mxu0 %v1807
    %2651 = vmatprep.subr.bf16.mxu0 %v1816
    %2652 = vmatpush1.bf16.msra.mxu0 %v1815
    %2653 = vmatprep.subr.bf16.mxu0 %v1824
    %2654 = vmatpush1.bf16.msra.mxu0 %v1823
    %2655 = vmatprep.subr.bf16.mxu0 %v1832
    %2656 = vmatpush1.bf16.msra.mxu0 %v1831
    %2657 = vmatprep.subr.bf16.mxu0 %v1840
    %2658 = vmatpush1.bf16.msra.mxu0 %v1839
    %2659 = vmatprep.subr.bf16.mxu0 %v1848
    %2660 = vmatpush1.bf16.msra.mxu0 %v1847
    %2661 = vmatprep.subr.bf16.mxu0 %v1856
    %2662 = vmatpush1.bf16.msra.mxu0 %v1855
    %2663 = vmatprep.subr.bf16.mxu0 %v1864
    %2664 = vmatpush1.bf16.msra.mxu0 %v1863
    %2665 = vmatprep.subr.bf16.mxu0 %v1872
    %2666 = vmatpush1.bf16.msra.mxu0 %v1871
    %2667 = vmatprep.subr.bf16.mxu0 %v1880
    %2668 = vmatpush1.bf16.msra.mxu0 %v1879
    %2669 = vmatprep.subr.bf16.mxu0 %v1888
    %2670 = vmatpush1.bf16.msra.mxu0 %v1887
    %2671 = vmatprep.subr.bf16.mxu0 %v1896
    %2672 = vmatpush1.bf16.msra.mxu0 %v1895
    %2673 = vmatprep.subr.bf16.mxu0 %v1904
    %2674 = vmatpush1.bf16.msra.mxu0 %v1903
    %2675 = vmatprep.subr.bf16.mxu0 %v1912
    %2676 = vmatpush1.bf16.msra.mxu0 %v1911
    %2677 = vmatprep.subr.bf16.mxu0 %v1920
    %2678 = vmatpush1.bf16.msra.mxu0 %v1919
    %2679 = vmatprep.subr.bf16.mxu0 %v1928
    %2680 = vmatpush1.bf16.msra.mxu0 %v1927
    %2681 = vmatprep.mubr.bf16.mxu0 %v474
    %2682 = vmatmul.mubr.bf16.gmra.mrb[0].mxu0 %v473
    %v2683 = vpop.f32.mrb[0].mxu0
    %v2684 = vadd.f32 %v2633, %v2683
    %v2685 = vpop.f32.mrb[0].mxu0
    %v2686 = vadd.f32 %v2635, %v2685
    %v2687 = vpop.f32.mrb[0].mxu0
    %v2688 = vadd.f32 %v2637, %v2687
    %v2689 = vpop.f32.mrb[0].mxu0
    %v2690 = vadd.f32 %v2639, %v2689
    %2691 = vmatprep.mubr.bf16.mxu0 %v480
    %2692 = vmatmul.mubr.bf16.gmra.mrb[0].mxu0 %v479
    %v2693 = vpop.f32.mrb[0].mxu0
    %v2694 = vadd.f32 %v2643, %v2693
    %v2695 = vpop.f32.mrb[0].mxu0
    %v2696 = vadd.f32 %v2645, %v2695
    %v2697 = vpop.f32.mrb[0].mxu0
    %v2698 = vpop.f32.mrb[0].mxu0
    %2699 = vdwg.mxu0
    %2700 = vmatprep.subr.bf16.mxu0 %v1936
    %2701 = vmatpush1.bf16.msra.mxu0 %v1935
    %2702 = vmatprep.subr.bf16.mxu0 %v1944
    %2703 = vmatpush1.bf16.msra.mxu0 %v1943
    %2704 = vmatprep.subr.bf16.mxu0 %v1952
    %2705 = vmatpush1.bf16.msra.mxu0 %v1951
    %2706 = vmatprep.subr.bf16.mxu0 %v1960
    %2707 = vmatpush1.bf16.msra.mxu0 %v1959
    %2708 = vmatprep.subr.bf16.mxu0 %v1968
    %2709 = vmatpush1.bf16.msra.mxu0 %v1967
    %2710 = vmatprep.subr.bf16.mxu0 %v1976
    %2711 = vmatpush1.bf16.msra.mxu0 %v1975
    %2712 = vmatprep.subr.bf16.mxu0 %v1984
    %2713 = vmatpush1.bf16.msra.mxu0 %v1983
    %2714 = vmatprep.subr.bf16.mxu0 %v1992
    %2715 = vmatpush1.bf16.msra.mxu0 %v1991
    %2716 = vmatprep.subr.bf16.mxu0 %v2000
    %2717 = vmatpush1.bf16.msra.mxu0 %v1999
    %2718 = vmatprep.subr.bf16.mxu0 %v2008
    %2719 = vmatpush1.bf16.msra.mxu0 %v2007
    %2720 = vmatprep.subr.bf16.mxu0 %v2016
    %2721 = vmatpush1.bf16.msra.mxu0 %v2015
    %2722 = vmatprep.subr.bf16.mxu0 %v2024
    %2723 = vmatpush1.bf16.msra.mxu0 %v2023
    %2724 = vmatprep.subr.bf16.mxu0 %v2032
    %2725 = vmatpush1.bf16.msra.mxu0 %v2031
    %2726 = vmatprep.subr.bf16.mxu0 %v2040
    %2727 = vmatpush1.bf16.msra.mxu0 %v2039
    %2728 = vmatprep.subr.bf16.mxu0 %v2048
    %2729 = vmatpush1.bf16.msra.mxu0 %v2047
    %2730 = vmatprep.subr.bf16.mxu0 %v2056
    %2731 = vmatpush1.bf16.msra.mxu0 %v2055
    %2732 = vmatprep.mubr.bf16.mxu0 %v476
    %2733 = vmatmul.mubr.bf16.gmra.mrb[0].mxu0 %v475
    %v2734 = vpop.f32.mrb[0].mxu0
    %v2735 = vadd.f32 %v2684, %v2734
    %v2736 = vpop.f32.mrb[0].mxu0
    %v2737 = vadd.f32 %v2686, %v2736
    %v2738 = vpop.f32.mrb[0].mxu0
    %v2739 = vadd.f32 %v2688, %v2738
    %v2740 = vpop.f32.mrb[0].mxu0
    %v2741 = vadd.f32 %v2690, %v2740
    %2742 = vmatprep.mubr.bf16.mxu0 %v482
    %2743 = vmatmul.mubr.bf16.gmra.mrb[0].mxu0 %v481
    %v2744 = vpop.f32.mrb[0].mxu0
    %v2745 = vadd.f32 %v2694, %v2744
    %v2746 = vpop.f32.mrb[0].mxu0
    %v2747 = vadd.f32 %v2696, %v2746
    %v2748 = vpop.f32.mrb[0].mxu0
    %v2749 = vpop.f32.mrb[0].mxu0
    %2750 = vdwg.mxu0
    %2751 = vmatprep.subr.bf16.mxu0 %v1682
    %2752 = vmatpush1.bf16.msra.mxu0 %v1681
    %2753 = vmatprep.subr.bf16.mxu0 %v1690
    %2754 = vmatpush1.bf16.msra.mxu0 %v1689
    %2755 = vmatprep.subr.bf16.mxu0 %v1698
    %2756 = vmatpush1.bf16.msra.mxu0 %v1697
    %2757 = vmatprep.subr.bf16.mxu0 %v1706
    %2758 = vmatpush1.bf16.msra.mxu0 %v1705
    %2759 = vmatprep.subr.bf16.mxu0 %v1714
    %2760 = vmatpush1.bf16.msra.mxu0 %v1713
    %2761 = vmatprep.subr.bf16.mxu0 %v1722
    %2762 = vmatpush1.bf16.msra.mxu0 %v1721
    %2763 = vmatprep.subr.bf16.mxu0 %v1730
    %2764 = vmatpush1.bf16.msra.mxu0 %v1729
    %2765 = vmatprep.subr.bf16.mxu0 %v1738
    %2766 = vmatpush1.bf16.msra.mxu0 %v1737
    %2767 = vmatprep.subr.bf16.mxu0 %v1746
    %2768 = vmatpush1.bf16.msra.mxu0 %v1745
    %2769 = vmatprep.subr.bf16.mxu0 %v1754
    %2770 = vmatpush1.bf16.msra.mxu0 %v1753
    %2771 = vmatprep.subr.bf16.mxu0 %v1762
    %2772 = vmatpush1.bf16.msra.mxu0 %v1761
    %2773 = vmatprep.subr.bf16.mxu0 %v1770
    %2774 = vmatpush1.bf16.msra.mxu0 %v1769
    %2775 = vmatprep.subr.bf16.mxu0 %v1778
    %2776 = vmatpush1.bf16.msra.mxu0 %v1777
    %2777 = vmatprep.subr.bf16.mxu0 %v1786
    %2778 = vmatpush1.bf16.msra.mxu0 %v1785
    %2779 = vmatprep.subr.bf16.mxu0 %v1794
    %2780 = vmatpush1.bf16.msra.mxu0 %v1793
    %2781 = vmatprep.subr.bf16.mxu0 %v1802
    %2782 = vmatpush1.bf16.msra.mxu0 %v1801
    %2783 = vmatprep.mubr.bf16.mxu0 %v472
    %2784 = vmatmul.mubr.bf16.gmra.mrb[0].mxu0 %v471
    %v2785 = vpop.f32.mrb[0].mxu0
    %v2786 = vadd.f32 %v504, %v2785
    %v2787 = vpop.f32.mrb[0].mxu0
    %v2788 = vadd.f32 %v508, %v2787
    %v2789 = vpop.f32.mrb[0].mxu0
    %v2790 = vadd.f32 %v504, %v2789
    %v2791 = vpop.f32.mrb[0].mxu0
    %v2792 = vadd.f32 %v508, %v2791
    %2793 = vmatprep.mubr.bf16.mxu0 %v478
    %2794 = vmatmul.mubr.bf16.gmra.mrb[0].mxu0 %v477
    %v2795 = vpop.f32.mrb[0].mxu0
    %v2796 = vadd.f32 %v504, %v2795
    %v2797 = vpop.f32.mrb[0].mxu0
    %v2798 = vadd.f32 %v508, %v2797
    %v2799 = vpop.f32.mrb[0].mxu0
    %v2800 = vpop.f32.mrb[0].mxu0
    %2801 = vdwg.mxu0
    %2802 = vmatprep.subr.bf16.mxu0 %v1810
    %2803 = vmatpush1.bf16.msra.mxu0 %v1809
    %2804 = vmatprep.subr.bf16.mxu0 %v1818
    %2805 = vmatpush1.bf16.msra.mxu0 %v1817
    %2806 = vmatprep.subr.bf16.mxu0 %v1826
    %2807 = vmatpush1.bf16.msra.mxu0 %v1825
    %2808 = vmatprep.subr.bf16.mxu0 %v1834
    %2809 = vmatpush1.bf16.msra.mxu0 %v1833
    %2810 = vmatprep.subr.bf16.mxu0 %v1842
    %2811 = vmatpush1.bf16.msra.mxu0 %v1841
    %2812 = vmatprep.subr.bf16.mxu0 %v1850
    %2813 = vmatpush1.bf16.msra.mxu0 %v1849
    %2814 = vmatprep.subr.bf16.mxu0 %v1858
    %2815 = vmatpush1.bf16.msra.mxu0 %v1857
    %2816 = vmatprep.subr.bf16.mxu0 %v1866
    %2817 = vmatpush1.bf16.msra.mxu0 %v1865
    %2818 = vmatprep.subr.bf16.mxu0 %v1874
    %2819 = vmatpush1.bf16.msra.mxu0 %v1873
    %2820 = vmatprep.subr.bf16.mxu0 %v1882
    %2821 = vmatpush1.bf16.msra.mxu0 %v1881
    %2822 = vmatprep.subr.bf16.mxu0 %v1890
    %2823 = vmatpush1.bf16.msra.mxu0 %v1889
    %2824 = vmatprep.subr.bf16.mxu0 %v1898
    %2825 = vmatpush1.bf16.msra.mxu0 %v1897
    %2826 = vmatprep.subr.bf16.mxu0 %v1906
    %2827 = vmatpush1.bf16.msra.mxu0 %v1905
    %2828 = vmatprep.subr.bf16.mxu0 %v1914
    %2829 = vmatpush1.bf16.msra.mxu0 %v1913
    %2830 = vmatprep.subr.bf16.mxu0 %v1922
    %2831 = vmatpush1.bf16.msra.mxu0 %v1921
    %2832 = vmatprep.subr.bf16.mxu0 %v1930
    %2833 = vmatpush1.bf16.msra.mxu0 %v1929
    %2834 = vmatprep.mubr.bf16.mxu0 %v474
    %2835 = vmatmul.mubr.bf16.gmra.mrb[0].mxu0 %v473
    %v2836 = vpop.f32.mrb[0].mxu0
    %v2837 = vadd.f32 %v2786, %v2836
    %v2838 = vpop.f32.mrb[0].mxu0
    %v2839 = vadd.f32 %v2788, %v2838
    %v2840 = vpop.f32.mrb[0].mxu0
    %v2841 = vadd.f32 %v2790, %v2840
    %v2842 = vpop.f32.mrb[0].mxu0
    %v2843 = vadd.f32 %v2792, %v2842
    %2844 = vmatprep.mubr.bf16.mxu0 %v480
    %2845 = vmatmul.mubr.bf16.gmra.mrb[0].mxu0 %v479
    %v2846 = vpop.f32.mrb[0].mxu0
    %v2847 = vadd.f32 %v2796, %v2846
    %v2848 = vpop.f32.mrb[0].mxu0
    %v2849 = vadd.f32 %v2798, %v2848
    %v2850 = vpop.f32.mrb[0].mxu0
    %v2851 = vpop.f32.mrb[0].mxu0
    %2852 = vdwg.mxu0
    %2853 = vmatprep.subr.bf16.mxu0 %v1938
    %2854 = vmatpush1.bf16.msra.mxu0 %v1937
    %2855 = vmatprep.subr.bf16.mxu0 %v1946
    %2856 = vmatpush1.bf16.msra.mxu0 %v1945
    %2857 = vmatprep.subr.bf16.mxu0 %v1954
    %2858 = vmatpush1.bf16.msra.mxu0 %v1953
    %2859 = vmatprep.subr.bf16.mxu0 %v1962
    %2860 = vmatpush1.bf16.msra.mxu0 %v1961
    %2861 = vmatprep.subr.bf16.mxu0 %v1970
    %2862 = vmatpush1.bf16.msra.mxu0 %v1969
    %2863 = vmatprep.subr.bf16.mxu0 %v1978
    %2864 = vmatpush1.bf16.msra.mxu0 %v1977
    %2865 = vmatprep.subr.bf16.mxu0 %v1986
    %2866 = vmatpush1.bf16.msra.mxu0 %v1985
    %2867 = vmatprep.subr.bf16.mxu0 %v1994
    %2868 = vmatpush1.bf16.msra.mxu0 %v1993
    %2869 = vmatprep.subr.bf16.mxu0 %v2002
    %2870 = vmatpush1.bf16.msra.mxu0 %v2001
    %2871 = vmatprep.subr.bf16.mxu0 %v2010
    %2872 = vmatpush1.bf16.msra.mxu0 %v2009
    %2873 = vmatprep.subr.bf16.mxu0 %v2018
    %2874 = vmatpush1.bf16.msra.mxu0 %v2017
    %2875 = vmatprep.subr.bf16.mxu0 %v2026
    %2876 = vmatpush1.bf16.msra.mxu0 %v2025
    %2877 = vmatprep.subr.bf16.mxu0 %v2034
    %2878 = vmatpush1.bf16.msra.mxu0 %v2033
    %2879 = vmatprep.subr.bf16.mxu0 %v2042
    %2880 = vmatpush1.bf16.msra.mxu0 %v2041
    %2881 = vmatprep.subr.bf16.mxu0 %v2050
    %2882 = vmatpush1.bf16.msra.mxu0 %v2049
    %2883 = vmatprep.subr.bf16.mxu0 %v2058
    %2884 = vmatpush1.bf16.msra.mxu0 %v2057
    %2885 = vmatprep.mubr.bf16.mxu0 %v476
    %2886 = vmatmul.mubr.bf16.gmra.mrb[0].mxu0 %v475
    %v2887 = vpop.f32.mrb[0].mxu0
    %v2888 = vadd.f32 %v2837, %v2887
    %v2889 = vpop.f32.mrb[0].mxu0
    %v2890 = vadd.f32 %v2839, %v2889
    %v2891 = vpop.f32.mrb[0].mxu0
    %v2892 = vadd.f32 %v2841, %v2891
    %v2893 = vpop.f32.mrb[0].mxu0
    %v2894 = vadd.f32 %v2843, %v2893
    %2895 = vmatprep.mubr.bf16.mxu0 %v482
    %2896 = vmatmul.mubr.bf16.gmra.mrb[0].mxu0 %v481
    %v2897 = vpop.f32.mrb[0].mxu0
    %v2898 = vadd.f32 %v2847, %v2897
    %v2899 = vpop.f32.mrb[0].mxu0
    %v2900 = vadd.f32 %v2849, %v2899
    %v2901 = vpop.f32.mrb[0].mxu0
    %v2902 = vpop.f32.mrb[0].mxu0
    %2903 = vdwg.mxu0
    %2904 = vmatprep.subr.bf16.mxu0 %v1684
    %2905 = vmatpush1.bf16.msra.mxu0 %v1683
    %2906 = vmatprep.subr.bf16.mxu0 %v1692
    %2907 = vmatpush1.bf16.msra.mxu0 %v1691
    %2908 = vmatprep.subr.bf16.mxu0 %v1700
    %2909 = vmatpush1.bf16.msra.mxu0 %v1699
    %2910 = vmatprep.subr.bf16.mxu0 %v1708
    %2911 = vmatpush1.bf16.msra.mxu0 %v1707
    %2912 = vmatprep.subr.bf16.mxu0 %v1716
    %2913 = vmatpush1.bf16.msra.mxu0 %v1715
    %2914 = vmatprep.subr.bf16.mxu0 %v1724
    %2915 = vmatpush1.bf16.msra.mxu0 %v1723
    %2916 = vmatprep.subr.bf16.mxu0 %v1732
    %2917 = vmatpush1.bf16.msra.mxu0 %v1731
    %2918 = vmatprep.subr.bf16.mxu0 %v1740
    %2919 = vmatpush1.bf16.msra.mxu0 %v1739
    %2920 = vmatprep.subr.bf16.mxu0 %v1748
    %2921 = vmatpush1.bf16.msra.mxu0 %v1747
    %2922 = vmatprep.subr.bf16.mxu0 %v1756
    %2923 = vmatpush1.bf16.msra.mxu0 %v1755
    %2924 = vmatprep.subr.bf16.mxu0 %v1764
    %2925 = vmatpush1.bf16.msra.mxu0 %v1763
    %2926 = vmatprep.subr.bf16.mxu0 %v1772
    %2927 = vmatpush1.bf16.msra.mxu0 %v1771
    %2928 = vmatprep.subr.bf16.mxu0 %v1780
    %2929 = vmatpush1.bf16.msra.mxu0 %v1779
    %2930 = vmatprep.subr.bf16.mxu0 %v1788
    %2931 = vmatpush1.bf16.msra.mxu0 %v1787
    %2932 = vmatprep.subr.bf16.mxu0 %v1796
    %2933 = vmatpush1.bf16.msra.mxu0 %v1795
    %2934 = vmatprep.subr.bf16.mxu0 %v1804
    %2935 = vmatpush1.bf16.msra.mxu0 %v1803
    %2936 = vmatprep.mubr.bf16.mxu0 %v472
    %2937 = vmatmul.mubr.bf16.gmra.mrb[0].mxu0 %v471
    %v2938 = vpop.f32.mrb[0].mxu0
    %v2939 = vadd.f32 %v512, %v2938
    %v2940 = vpop.f32.mrb[0].mxu0
    %v2941 = vadd.f32 %v516, %v2940
    %v2942 = vpop.f32.mrb[0].mxu0
    %v2943 = vadd.f32 %v512, %v2942
    %v2944 = vpop.f32.mrb[0].mxu0
    %v2945 = vadd.f32 %v516, %v2944
    %2946 = vmatprep.mubr.bf16.mxu0 %v478
    %2947 = vmatmul.mubr.bf16.gmra.mrb[0].mxu0 %v477
    %v2948 = vpop.f32.mrb[0].mxu0
    %v2949 = vadd.f32 %v512, %v2948
    %v2950 = vpop.f32.mrb[0].mxu0
    %v2951 = vadd.f32 %v516, %v2950
    %v2952 = vpop.f32.mrb[0].mxu0
    %v2953 = vpop.f32.mrb[0].mxu0
    %2954 = vdwg.mxu0
    %2955 = vmatprep.subr.bf16.mxu0 %v1812
    %2956 = vmatpush1.bf16.msra.mxu0 %v1811
    %2957 = vmatprep.subr.bf16.mxu0 %v1820
    %2958 = vmatpush1.bf16.msra.mxu0 %v1819
    %2959 = vmatprep.subr.bf16.mxu0 %v1828
    %2960 = vmatpush1.bf16.msra.mxu0 %v1827
    %2961 = vmatprep.subr.bf16.mxu0 %v1836
    %2962 = vmatpush1.bf16.msra.mxu0 %v1835
    %2963 = vmatprep.subr.bf16.mxu0 %v1844
    %2964 = vmatpush1.bf16.msra.mxu0 %v1843
    %2965 = vmatprep.subr.bf16.mxu0 %v1852
    %2966 = vmatpush1.bf16.msra.mxu0 %v1851
    %2967 = vmatprep.subr.bf16.mxu0 %v1860
    %2968 = vmatpush1.bf16.msra.mxu0 %v1859
    %2969 = vmatprep.subr.bf16.mxu0 %v1868
    %2970 = vmatpush1.bf16.msra.mxu0 %v1867
    %2971 = vmatprep.subr.bf16.mxu0 %v1876
    %2972 = vmatpush1.bf16.msra.mxu0 %v1875
    %2973 = vmatprep.subr.bf16.mxu0 %v1884
    %2974 = vmatpush1.bf16.msra.mxu0 %v1883
    %2975 = vmatprep.subr.bf16.mxu0 %v1892
    %2976 = vmatpush1.bf16.msra.mxu0 %v1891
    %2977 = vmatprep.subr.bf16.mxu0 %v1900
    %2978 = vmatpush1.bf16.msra.mxu0 %v1899
    %2979 = vmatprep.subr.bf16.mxu0 %v1908
    %2980 = vmatpush1.bf16.msra.mxu0 %v1907
    %2981 = vmatprep.subr.bf16.mxu0 %v1916
    %2982 = vmatpush1.bf16.msra.mxu0 %v1915
    %2983 = vmatprep.subr.bf16.mxu0 %v1924
    %2984 = vmatpush1.bf16.msra.mxu0 %v1923
    %2985 = vmatprep.subr.bf16.mxu0 %v1932
    %2986 = vmatpush1.bf16.msra.mxu0 %v1931
    %2987 = vmatprep.mubr.bf16.mxu0 %v474
    %2988 = vmatmul.mubr.bf16.gmra.mrb[0].mxu0 %v473
    %v2989 = vpop.f32.mrb[0].mxu0
    %v2990 = vadd.f32 %v2939, %v2989
    %v2991 = vpop.f32.mrb[0].mxu0
    %v2992 = vadd.f32 %v2941, %v2991
    %v2993 = vpop.f32.mrb[0].mxu0
    %v2994 = vadd.f32 %v2943, %v2993
    %v2995 = vpop.f32.mrb[0].mxu0
    %v2996 = vadd.f32 %v2945, %v2995
    %2997 = vmatprep.mubr.bf16.mxu0 %v480
    %2998 = vmatmul.mubr.bf16.gmra.mrb[0].mxu0 %v479
    %v2999 = vpop.f32.mrb[0].mxu0
    %v3000 = vadd.f32 %v2949, %v2999
    %v3001 = vpop.f32.mrb[0].mxu0
    %v3002 = vadd.f32 %v2951, %v3001
    %v3003 = vpop.f32.mrb[0].mxu0
    %v3004 = vpop.f32.mrb[0].mxu0
    %3005 = vdwg.mxu0
    %3006 = vmatprep.subr.bf16.mxu0 %v1940
    %3007 = vmatpush1.bf16.msra.mxu0 %v1939
    %3008 = vmatprep.subr.bf16.mxu0 %v1948
    %3009 = vmatpush1.bf16.msra.mxu0 %v1947
    %3010 = vmatprep.subr.bf16.mxu0 %v1956
    %3011 = vmatpush1.bf16.msra.mxu0 %v1955
    %3012 = vmatprep.subr.bf16.mxu0 %v1964
    %3013 = vmatpush1.bf16.msra.mxu0 %v1963
    %3014 = vmatprep.subr.bf16.mxu0 %v1972
    %3015 = vmatpush1.bf16.msra.mxu0 %v1971
    %3016 = vmatprep.subr.bf16.mxu0 %v1980
    %3017 = vmatpush1.bf16.msra.mxu0 %v1979
    %3018 = vmatprep.subr.bf16.mxu0 %v1988
    %3019 = vmatpush1.bf16.msra.mxu0 %v1987
    %3020 = vmatprep.subr.bf16.mxu0 %v1996
    %3021 = vmatpush1.bf16.msra.mxu0 %v1995
    %3022 = vmatprep.subr.bf16.mxu0 %v2004
    %3023 = vmatpush1.bf16.msra.mxu0 %v2003
    %3024 = vmatprep.subr.bf16.mxu0 %v2012
    %3025 = vmatpush1.bf16.msra.mxu0 %v2011
    %3026 = vmatprep.subr.bf16.mxu0 %v2020
    %3027 = vmatpush1.bf16.msra.mxu0 %v2019
    %3028 = vmatprep.subr.bf16.mxu0 %v2028
    %3029 = vmatpush1.bf16.msra.mxu0 %v2027
    %3030 = vmatprep.subr.bf16.mxu0 %v2036
    %3031 = vmatpush1.bf16.msra.mxu0 %v2035
    %3032 = vmatprep.subr.bf16.mxu0 %v2044
    %3033 = vmatpush1.bf16.msra.mxu0 %v2043
    %3034 = vmatprep.subr.bf16.mxu0 %v2052
    %3035 = vmatpush1.bf16.msra.mxu0 %v2051
    %3036 = vmatprep.subr.bf16.mxu0 %v2060
    %3037 = vmatpush1.bf16.msra.mxu0 %v2059
    %3038 = vmatprep.mubr.bf16.mxu0 %v476
    %3039 = vmatmul.mubr.bf16.gmra.mrb[0].mxu0 %v475
    %v3040 = vpop.f32.mrb[0].mxu0
    %v3041 = vadd.f32 %v2990, %v3040
    %v3042 = vpop.f32.mrb[0].mxu0
    %v3043 = vadd.f32 %v2992, %v3042
    %v3044 = vpop.f32.mrb[0].mxu0
    %v3045 = vadd.f32 %v2994, %v3044
    %v3046 = vpop.f32.mrb[0].mxu0
    %v3047 = vadd.f32 %v2996, %v3046
    %3048 = vmatprep.mubr.bf16.mxu0 %v482
    %3049 = vmatmul.mubr.bf16.gmra.mrb[0].mxu0 %v481
    %v3050 = vpop.f32.mrb[0].mxu0
    %v3051 = vadd.f32 %v3000, %v3050
    %v3052 = vpop.f32.mrb[0].mxu0
    %v3053 = vadd.f32 %v3002, %v3052
    %v3054 = vpop.f32.mrb[0].mxu0
    %v3055 = vpop.f32.mrb[0].mxu0
    %3056 = vdwg.mxu0
    %v3057 = vld [vmem:[#allocation2] sm:$0xff]
    %v3058 = vld [vmem:[#allocation2 + $0x8] sm:$0xff]
    %v3059 = vmul.f32 %v3057, %v3057
    %v3060 = vmul.f32 %v3058, %v3058
    %v3063 = vcombine.high %v3059, %v3059
    %v3065 = vunpack.c.l.s4 1983009808
    %v3066 = vunpack.c.0.s8 %v3065
    %v3067 = vlaneseq
    %v3068 = vshrl.u32 %v3067, 7
    %v3069 = vsub.s32 %v3066, %v3068
    %v3070 = vrot.slane %v3059, %v3069
    %v3072 = vunpack.c.l.s4 1983009808
    %v3073 = vunpack.c.0.s8 %v3072
    %v3074 = vlaneseq
    %v3075 = vshrl.u32 %v3074, 7
    %v3076 = vsub.s32 %v3073, %v3075
    %v3077 = vrot.slane %v3063, %v3076
    %v3078 = vcombine.high %v3070, %v3070
    %v3079 = vcombine.high %v3077, %v3077
    %v3080 = vcombine.high %v3060, %v3060
    %v3082 = vunpack.c.l.s4 1983009808
    %v3083 = vunpack.c.0.s8 %v3082
    %v3084 = vlaneseq
    %v3085 = vshrl.u32 %v3084, 7
    %v3086 = vsub.s32 %v3083, %v3085
    %v3087 = vrot.slane %v3060, %v3086
    %v3089 = vunpack.c.l.s4 1983009808
    %v3090 = vunpack.c.0.s8 %v3089
    %v3091 = vlaneseq
    %v3092 = vshrl.u32 %v3091, 7
    %v3093 = vsub.s32 %v3090, %v3092
    %v3094 = vrot.slane %v3080, %v3093
    %v3095 = vcombine.high %v3087, %v3087
    %v3096 = vcombine.high %v3094, %v3094
    %vm3105 = vcmask 1041408
    %v3106 = vsel %vm3105, %v3070, 0.0
    %v3107 = vsel %vm3105, %v3078, 0.0
    %v3108 = vadd.f32 %v3106, %v3107
    %v3109 = vsel %vm3105, %v3077, 0.0
    %v3110 = vadd.f32 %v3108, %v3109
    %v3111 = vsel %vm3105, %v3079, 0.0
    %v3112 = vadd.f32 %v3110, %v3111
    %v3113 = vsel %vm3105, %v3087, 0.0
    %v3114 = vadd.f32 %v3112, %v3113
    %v3115 = vsel %vm3105, %v3095, 0.0
    %v3116 = vadd.f32 %v3114, %v3115
    %v3117 = vsel %vm3105, %v3094, 0.0
    %v3118 = vadd.f32 %v3116, %v3117
    %v3119 = vsel %vm3105, %v3096, 0.0
    %v3120 = vadd.f32 %v3118, %v3119
    %3121 = vadd.xlane.f32.xlu0 %v3120
    %v3122 = vpop.xlane.xlu0 %3121
    %v3123 = vmax.f32 %v3122, 1e-24
    %v3124 = vrsqrt.pop %v3123
    %v3127 = vunpack.c.l.s4 269488144
    %v3128 = vunpack.c.0.s8 %v3127
    %v3129 = vlaneseq
    %v3130 = vshrl.u32 %v3129, 7
    %v3131 = vsub.s32 %v3128, %v3130
    %v3132 = vrot.slane %v3124, %v3131
    %v3134 = vmul.f32 %v3057, %v3132
    %v3135 = vmul.f32 %v3058, %v3132
    %v3136 = vmul.f32 %v2592, %v2592
    %v3137 = vmul.f32 %v2594, %v2594
    %v3138 = vmul.f32 %v2745, %v2745
    %v3139 = vmul.f32 %v2747, %v2747
    %v3140 = vmul.f32 %v2898, %v2898
    %v3141 = vmul.f32 %v2900, %v2900
    %v3142 = vmul.f32 %v3051, %v3051
    %v3143 = vmul.f32 %v3053, %v3053
    %v3144 = vsel %vm3105, %v3136, 0.0
    %v3145 = vsel %vm3105, %v3137, 0.0
    %v3146 = vadd.f32 %v3144, %v3145
    %v3147 = vsel %vm3105, %v3138, 0.0
    %v3148 = vadd.f32 %v3146, %v3147
    %v3149 = vsel %vm3105, %v3139, 0.0
    %v3150 = vadd.f32 %v3148, %v3149
    %v3151 = vsel %vm3105, %v3140, 0.0
    %v3152 = vadd.f32 %v3150, %v3151
    %v3153 = vsel %vm3105, %v3141, 0.0
    %v3154 = vadd.f32 %v3152, %v3153
    %v3155 = vsel %vm3105, %v3142, 0.0
    %v3156 = vadd.f32 %v3154, %v3155
    %v3157 = vsel %vm3105, %v3143, 0.0
    %v3158 = vadd.f32 %v3156, %v3157
    %3159 = vadd.xlane.f32.xlu0 %v3158
    %v3160 = vpop.xlane.xlu0 %3159
    %v3161 = vmax.f32 %v3160, 1e-24
    %v3162 = vrsqrt.pop %v3161
    %v3163 = vmul.f32 %v2592, %v3162
    %v3164 = vmul.f32 %v2594, %v3162
    %v3165 = vmul.f32 %v2745, %v3162
    %v3166 = vmul.f32 %v2747, %v3162
    %v3167 = vmul.f32 %v2898, %v3162
    %v3168 = vmul.f32 %v2900, %v3162
    %v3169 = vmul.f32 %v3051, %v3162
    %v3170 = vmul.f32 %v3053, %v3162
    %v3179 = vcombine.low %v3163, %v3164
    %v3180 = vcombine.low %v3165, %v3166
    %v3182 = vunpack.c.l.s4 1983009808
    %v3183 = vunpack.c.0.s8 %v3182
    %v3184 = vlaneseq
    %v3185 = vshrl.u32 %v3184, 7
    %v3186 = vsub.s32 %v3183, %v3185
    %v3187 = vrot.slane %v3179, %v3186
    %v3189 = vunpack.c.l.s4 1983009808
    %v3190 = vunpack.c.0.s8 %v3189
    %v3191 = vlaneseq
    %v3192 = vshrl.u32 %v3191, 7
    %v3193 = vsub.s32 %v3190, %v3192
    %v3194 = vrot.slane %v3180, %v3193
    %v3195 = vcombine.low %v3187, %v3194
    %v3196 = vcombine.low %v3167, %v3168
    %v3197 = vcombine.low %v3169, %v3170
    %v3199 = vunpack.c.l.s4 1983009808
    %v3200 = vunpack.c.0.s8 %v3199
    %v3201 = vlaneseq
    %v3202 = vshrl.u32 %v3201, 7
    %v3203 = vsub.s32 %v3200, %v3202
    %v3204 = vrot.slane %v3196, %v3203
    %v3206 = vunpack.c.l.s4 1983009808
    %v3207 = vunpack.c.0.s8 %v3206
    %v3208 = vlaneseq
    %v3209 = vshrl.u32 %v3208, 7
    %v3210 = vsub.s32 %v3207, %v3209
    %v3211 = vrot.slane %v3197, %v3210
    %v3212 = vcombine.low %v3204, %v3211
    %v3215 = vadd.f32 %v3134, %v3195
    %v3216 = vadd.f32 %v3135, %v3212
    %v3219 = vcombine.high %v3215, %v3215
    %v3221 = vunpack.c.l.s4 1983009808
    %v3222 = vunpack.c.0.s8 %v3221
    %v3223 = vlaneseq
    %v3224 = vshrl.u32 %v3223, 7
    %v3225 = vsub.s32 %v3222, %v3224
    %v3226 = vrot.slane %v3215, %v3225
    %v3228 = vunpack.c.l.s4 1983009808
    %v3229 = vunpack.c.0.s8 %v3228
    %v3230 = vlaneseq
    %v3231 = vshrl.u32 %v3230, 7
    %v3232 = vsub.s32 %v3229, %v3231
    %v3233 = vrot.slane %v3219, %v3232
    %v3234 = vcombine.high %v3226, %v3226
    %v3235 = vcombine.high %v3233, %v3233
    %v3236 = vcombine.high %v3216, %v3216
    %v3238 = vunpack.c.l.s4 1983009808
    %v3239 = vunpack.c.0.s8 %v3238
    %v3240 = vlaneseq
    %v3241 = vshrl.u32 %v3240, 7
    %v3242 = vsub.s32 %v3239, %v3241
    %v3243 = vrot.slane %v3216, %v3242
    %v3245 = vunpack.c.l.s4 1983009808
    %v3246 = vunpack.c.0.s8 %v3245
    %v3247 = vlaneseq
    %v3248 = vshrl.u32 %v3247, 7
    %v3249 = vsub.s32 %v3246, %v3248
    %v3250 = vrot.slane %v3236, %v3249
    %v3251 = vcombine.high %v3243, %v3243
    %v3252 = vcombine.high %v3250, %v3250
    %3261 = vmatprep.subr.mxu0 %v2584
    %3262 = vmatpush1.xpose.msra.mxu0 %v2582
    %3263 = vmatprep.subr.mxu0 %v2588
    %3264 = vmatpush1.xpose.msra.mxu0 %v2586
    %3265 = vmatprep.subr.mxu0 0.0
    %3266 = vmatpush1.xpose.msra.mxu0 0.0
    %3267 = vmatprep.subr.mxu0 0.0
    %3268 = vmatpush1.xpose.msra.mxu0 0.0
    %3269 = vmatprep.subr.mxu0 0.0
    %3270 = vmatpush1.xpose.msra.mxu0 0.0
    %3271 = vmatprep.subr.mxu0 0.0
    %3272 = vmatpush1.xpose.msra.mxu0 0.0
    %3273 = vmatprep.subr.mxu0 0.0
    %3274 = vmatpush1.xpose.msra.mxu0 0.0
    %3275 = vmatprep.subr.mxu0 0.0
    %3276 = vmatpush1.xpose.msra.mxu0 0.0
    %3277 = vmatprep.subr.mxu0 0.0
    %3278 = vmatpush1.xpose.msra.mxu0 0.0
    %3279 = vmatprep.subr.mxu0 0.0
    %3280 = vmatpush1.xpose.msra.mxu0 0.0
    %3281 = vmatprep.subr.mxu0 0.0
    %3282 = vmatpush1.xpose.msra.mxu0 0.0
    %3283 = vmatprep.subr.mxu0 0.0
    %3284 = vmatpush1.xpose.msra.mxu0 0.0
    %3285 = vmatprep.subr.mxu0 0.0
    %3286 = vmatpush1.xpose.msra.mxu0 0.0
    %3287 = vmatprep.subr.mxu0 0.0
    %3288 = vmatpush1.xpose.msra.mxu0 0.0
    %3289 = vmatprep.subr.mxu0 0.0
    %3290 = vmatpush1.xpose.msra.mxu0 0.0
    %3291 = vmatprep.subr.mxu0 0.0
    %3292 = vmatpush1.xpose.msra.mxu0 0.0
    %3293 = vmatprep.subr.mxu0 0.0
    %3294 = vmatpush1.xpose.msra.mxu0 0.0
    %3295 = vmatprep.subr.mxu0 0.0
    %3296 = vmatpush1.xpose.msra.mxu0 0.0
    %3297 = vmatprep.subr.mxu0 0.0
    %3298 = vmatpush1.xpose.msra.mxu0 0.0
    %3299 = vmatprep.subr.mxu0 0.0
    %3300 = vmatpush1.xpose.msra.mxu0 0.0
    %3301 = vmatprep.subr.mxu0 0.0
    %3302 = vmatpush1.xpose.msra.mxu0 0.0
    %3303 = vmatprep.subr.mxu0 0.0
    %3304 = vmatpush1.xpose.msra.mxu0 0.0
    %3305 = vmatprep.subr.mxu0 0.0
    %3306 = vmatpush1.xpose.msra.mxu0 0.0
    %3307 = vmatprep.subr.mxu0 0.0
    %3308 = vmatpush1.xpose.msra.mxu0 0.0
    %3309 = vmatprep.subr.mxu0 0.0
    %3310 = vmatpush1.xpose.msra.mxu0 0.0
    %3311 = vmatprep.subr.mxu0 0.0
    %3312 = vmatpush1.xpose.msra.mxu0 0.0
    %3313 = vmatprep.subr.mxu0 0.0
    %3314 = vmatpush1.xpose.msra.mxu0 0.0
    %3315 = vmatprep.subr.mxu0 0.0
    %3316 = vmatpush1.xpose.msra.mxu0 0.0
    %3317 = vmatprep.subr.mxu0 0.0
    %3318 = vmatpush1.xpose.msra.mxu0 0.0
    %3319 = vmatprep.subr.mxu0 0.0
    %3320 = vmatpush1.xpose.msra.mxu0 0.0
    %3321 = vmatprep.subr.mxu0 0.0
    %3322 = vmatpush1.xpose.msra.mxu0 0.0
    %3323 = vmatprep.subr.mxu0 0.0
    %3324 = vmatpush1.xpose.msra.mxu0 0.0
    %3325 = vmatprep.mubr.f32.mxu0 %v3234
    %3326 = vmatmul.mubr.f32.gmra.mrb[0].mxu0 %v3226
    %v3327 = vpop.f32.mrb[0].mxu0
    %v3328 = vadd.f32 0.0, %v3327
    %v3329 = vpop.f32.mrb[0].mxu0
    %3330 = vdwg.mxu0
    %3331 = vmatprep.subr.mxu0 %v2737
    %3332 = vmatpush1.xpose.msra.mxu0 %v2735
    %3333 = vmatprep.subr.mxu0 %v2741
    %3334 = vmatpush1.xpose.msra.mxu0 %v2739
    %3335 = vmatprep.subr.mxu0 0.0
    %3336 = vmatpush1.xpose.msra.mxu0 0.0
    %3337 = vmatprep.subr.mxu0 0.0
    %3338 = vmatpush1.xpose.msra.mxu0 0.0
    %3339 = vmatprep.subr.mxu0 0.0
    %3340 = vmatpush1.xpose.msra.mxu0 0.0
    %3341 = vmatprep.subr.mxu0 0.0
    %3342 = vmatpush1.xpose.msra.mxu0 0.0
    %3343 = vmatprep.subr.mxu0 0.0
    %3344 = vmatpush1.xpose.msra.mxu0 0.0
    %3345 = vmatprep.subr.mxu0 0.0
    %3346 = vmatpush1.xpose.msra.mxu0 0.0
    %3347 = vmatprep.subr.mxu0 0.0
    %3348 = vmatpush1.xpose.msra.mxu0 0.0
    %3349 = vmatprep.subr.mxu0 0.0
    %3350 = vmatpush1.xpose.msra.mxu0 0.0
    %3351 = vmatprep.subr.mxu0 0.0
    %3352 = vmatpush1.xpose.msra.mxu0 0.0
    %3353 = vmatprep.subr.mxu0 0.0
    %3354 = vmatpush1.xpose.msra.mxu0 0.0
    %3355 = vmatprep.subr.mxu0 0.0
    %3356 = vmatpush1.xpose.msra.mxu0 0.0
    %3357 = vmatprep.subr.mxu0 0.0
    %3358 = vmatpush1.xpose.msra.mxu0 0.0
    %3359 = vmatprep.subr.mxu0 0.0
    %3360 = vmatpush1.xpose.msra.mxu0 0.0
    %3361 = vmatprep.subr.mxu0 0.0
    %3362 = vmatpush1.xpose.msra.mxu0 0.0
    %3363 = vmatprep.subr.mxu0 0.0
    %3364 = vmatpush1.xpose.msra.mxu0 0.0
    %3365 = vmatprep.subr.mxu0 0.0
    %3366 = vmatpush1.xpose.msra.mxu0 0.0
    %3367 = vmatprep.subr.mxu0 0.0
    %3368 = vmatpush1.xpose.msra.mxu0 0.0
    %3369 = vmatprep.subr.mxu0 0.0
    %3370 = vmatpush1.xpose.msra.mxu0 0.0
    %3371 = vmatprep.subr.mxu0 0.0
    %3372 = vmatpush1.xpose.msra.mxu0 0.0
    %3373 = vmatprep.subr.mxu0 0.0
    %3374 = vmatpush1.xpose.msra.mxu0 0.0
    %3375 = vmatprep.subr.mxu0 0.0
    %3376 = vmatpush1.xpose.msra.mxu0 0.0
    %3377 = vmatprep.subr.mxu0 0.0
    %3378 = vmatpush1.xpose.msra.mxu0 0.0
    %3379 = vmatprep.subr.mxu0 0.0
    %3380 = vmatpush1.xpose.msra.mxu0 0.0
    %3381 = vmatprep.subr.mxu0 0.0
    %3382 = vmatpush1.xpose.msra.mxu0 0.0
    %3383 = vmatprep.subr.mxu0 0.0
    %3384 = vmatpush1.xpose.msra.mxu0 0.0
    %3385 = vmatprep.subr.mxu0 0.0
    %3386 = vmatpush1.xpose.msra.mxu0 0.0
    %3387 = vmatprep.subr.mxu0 0.0
    %3388 = vmatpush1.xpose.msra.mxu0 0.0
    %3389 = vmatprep.subr.mxu0 0.0
    %3390 = vmatpush1.xpose.msra.mxu0 0.0
    %3391 = vmatprep.subr.mxu0 0.0
    %3392 = vmatpush1.xpose.msra.mxu0 0.0
    %3393 = vmatprep.subr.mxu0 0.0
    %3394 = vmatpush1.xpose.msra.mxu0 0.0
    %3395 = vmatprep.mubr.f32.mxu0 %v3235
    %3396 = vmatmul.mubr.f32.gmra.mrb[0].mxu0 %v3233
    %v3397 = vpop.f32.mrb[0].mxu0
    %v3398 = vadd.f32 %v3328, %v3397
    %v3399 = vpop.f32.mrb[0].mxu0
    %3400 = vdwg.mxu0
    %3401 = vmatprep.subr.mxu0 %v2890
    %3402 = vmatpush1.xpose.msra.mxu0 %v2888
    %3403 = vmatprep.subr.mxu0 %v2894
    %3404 = vmatpush1.xpose.msra.mxu0 %v2892
    %3405 = vmatprep.subr.mxu0 0.0
    %3406 = vmatpush1.xpose.msra.mxu0 0.0
    %3407 = vmatprep.subr.mxu0 0.0
    %3408 = vmatpush1.xpose.msra.mxu0 0.0
    %3409 = vmatprep.subr.mxu0 0.0
    %3410 = vmatpush1.xpose.msra.mxu0 0.0
    %3411 = vmatprep.subr.mxu0 0.0
    %3412 = vmatpush1.xpose.msra.mxu0 0.0
    %3413 = vmatprep.subr.mxu0 0.0
    %3414 = vmatpush1.xpose.msra.mxu0 0.0
    %3415 = vmatprep.subr.mxu0 0.0
    %3416 = vmatpush1.xpose.msra.mxu0 0.0
    %3417 = vmatprep.subr.mxu0 0.0
    %3418 = vmatpush1.xpose.msra.mxu0 0.0
    %3419 = vmatprep.subr.mxu0 0.0
    %3420 = vmatpush1.xpose.msra.mxu0 0.0
    %3421 = vmatprep.subr.mxu0 0.0
    %3422 = vmatpush1.xpose.msra.mxu0 0.0
    %3423 = vmatprep.subr.mxu0 0.0
    %3424 = vmatpush1.xpose.msra.mxu0 0.0
    %3425 = vmatprep.subr.mxu0 0.0
    %3426 = vmatpush1.xpose.msra.mxu0 0.0
    %3427 = vmatprep.subr.mxu0 0.0
    %3428 = vmatpush1.xpose.msra.mxu0 0.0
    %3429 = vmatprep.subr.mxu0 0.0
    %3430 = vmatpush1.xpose.msra.mxu0 0.0
    %3431 = vmatprep.subr.mxu0 0.0
    %3432 = vmatpush1.xpose.msra.mxu0 0.0
    %3433 = vmatprep.subr.mxu0 0.0
    %3434 = vmatpush1.xpose.msra.mxu0 0.0
    %3435 = vmatprep.subr.mxu0 0.0
    %3436 = vmatpush1.xpose.msra.mxu0 0.0
    %3437 = vmatprep.subr.mxu0 0.0
    %3438 = vmatpush1.xpose.msra.mxu0 0.0
    %3439 = vmatprep.subr.mxu0 0.0
    %3440 = vmatpush1.xpose.msra.mxu0 0.0
    %3441 = vmatprep.subr.mxu0 0.0
    %3442 = vmatpush1.xpose.msra.mxu0 0.0
    %3443 = vmatprep.subr.mxu0 0.0
    %3444 = vmatpush1.xpose.msra.mxu0 0.0
    %3445 = vmatprep.subr.mxu0 0.0
    %3446 = vmatpush1.xpose.msra.mxu0 0.0
    %3447 = vmatprep.subr.mxu0 0.0
    %3448 = vmatpush1.xpose.msra.mxu0 0.0
    %3449 = vmatprep.subr.mxu0 0.0
    %3450 = vmatpush1.xpose.msra.mxu0 0.0
    %3451 = vmatprep.subr.mxu0 0.0
    %3452 = vmatpush1.xpose.msra.mxu0 0.0
    %3453 = vmatprep.subr.mxu0 0.0
    %3454 = vmatpush1.xpose.msra.mxu0 0.0
    %3455 = vmatprep.subr.mxu0 0.0
    %3456 = vmatpush1.xpose.msra.mxu0 0.0
    %3457 = vmatprep.subr.mxu0 0.0
    %3458 = vmatpush1.xpose.msra.mxu0 0.0
    %3459 = vmatprep.subr.mxu0 0.0
    %3460 = vmatpush1.xpose.msra.mxu0 0.0
    %3461 = vmatprep.subr.mxu0 0.0
    %3462 = vmatpush1.xpose.msra.mxu0 0.0
    %3463 = vmatprep.subr.mxu0 0.0
    %3464 = vmatpush1.xpose.msra.mxu0 0.0
    %3465 = vmatprep.mubr.f32.mxu0 %v3251
    %3466 = vmatmul.mubr.f32.gmra.mrb[0].mxu0 %v3243
    %v3467 = vpop.f32.mrb[0].mxu0
    %v3468 = vadd.f32 %v3398, %v3467
    %v3469 = vpop.f32.mrb[0].mxu0
    %3470 = vdwg.mxu0
    %3471 = vmatprep.subr.mxu0 %v3043
    %3472 = vmatpush1.xpose.msra.mxu0 %v3041
    %3473 = vmatprep.subr.mxu0 %v3047
    %3474 = vmatpush1.xpose.msra.mxu0 %v3045
    %3475 = vmatprep.subr.mxu0 0.0
    %3476 = vmatpush1.xpose.msra.mxu0 0.0
    %3477 = vmatprep.subr.mxu0 0.0
    %3478 = vmatpush1.xpose.msra.mxu0 0.0
    %3479 = vmatprep.subr.mxu0 0.0
    %3480 = vmatpush1.xpose.msra.mxu0 0.0
    %3481 = vmatprep.subr.mxu0 0.0
    %3482 = vmatpush1.xpose.msra.mxu0 0.0
    %3483 = vmatprep.subr.mxu0 0.0
    %3484 = vmatpush1.xpose.msra.mxu0 0.0
    %3485 = vmatprep.subr.mxu0 0.0
    %3486 = vmatpush1.xpose.msra.mxu0 0.0
    %3487 = vmatprep.subr.mxu0 0.0
    %3488 = vmatpush1.xpose.msra.mxu0 0.0
    %3489 = vmatprep.subr.mxu0 0.0
    %3490 = vmatpush1.xpose.msra.mxu0 0.0
    %3491 = vmatprep.subr.mxu0 0.0
    %3492 = vmatpush1.xpose.msra.mxu0 0.0
    %3493 = vmatprep.subr.mxu0 0.0
    %3494 = vmatpush1.xpose.msra.mxu0 0.0
    %3495 = vmatprep.subr.mxu0 0.0
    %3496 = vmatpush1.xpose.msra.mxu0 0.0
    %3497 = vmatprep.subr.mxu0 0.0
    %3498 = vmatpush1.xpose.msra.mxu0 0.0
    %3499 = vmatprep.subr.mxu0 0.0
    %3500 = vmatpush1.xpose.msra.mxu0 0.0
    %3501 = vmatprep.subr.mxu0 0.0
    %3502 = vmatpush1.xpose.msra.mxu0 0.0
    %3503 = vmatprep.subr.mxu0 0.0
    %3504 = vmatpush1.xpose.msra.mxu0 0.0
    %3505 = vmatprep.subr.mxu0 0.0
    %3506 = vmatpush1.xpose.msra.mxu0 0.0
    %3507 = vmatprep.subr.mxu0 0.0
    %3508 = vmatpush1.xpose.msra.mxu0 0.0
    %3509 = vmatprep.subr.mxu0 0.0
    %3510 = vmatpush1.xpose.msra.mxu0 0.0
    %3511 = vmatprep.subr.mxu0 0.0
    %3512 = vmatpush1.xpose.msra.mxu0 0.0
    %3513 = vmatprep.subr.mxu0 0.0
    %3514 = vmatpush1.xpose.msra.mxu0 0.0
    %3515 = vmatprep.subr.mxu0 0.0
    %3516 = vmatpush1.xpose.msra.mxu0 0.0
    %3517 = vmatprep.subr.mxu0 0.0
    %3518 = vmatpush1.xpose.msra.mxu0 0.0
    %3519 = vmatprep.subr.mxu0 0.0
    %3520 = vmatpush1.xpose.msra.mxu0 0.0
    %3521 = vmatprep.subr.mxu0 0.0
    %3522 = vmatpush1.xpose.msra.mxu0 0.0
    %3523 = vmatprep.subr.mxu0 0.0
    %3524 = vmatpush1.xpose.msra.mxu0 0.0
    %3525 = vmatprep.subr.mxu0 0.0
    %3526 = vmatpush1.xpose.msra.mxu0 0.0
    %3527 = vmatprep.subr.mxu0 0.0
    %3528 = vmatpush1.xpose.msra.mxu0 0.0
    %3529 = vmatprep.subr.mxu0 0.0
    %3530 = vmatpush1.xpose.msra.mxu0 0.0
    %3531 = vmatprep.subr.mxu0 0.0
    %3532 = vmatpush1.xpose.msra.mxu0 0.0
    %3533 = vmatprep.subr.mxu0 0.0
    %3534 = vmatpush1.xpose.msra.mxu0 0.0
    %3535 = vmatprep.mubr.f32.mxu0 %v3252
    %3536 = vmatmul.mubr.f32.gmra.mrb[0].mxu0 %v3250
    %v3537 = vpop.f32.mrb[0].mxu0
    %v3538 = vadd.f32 %v3468, %v3537
    %v3539 = vpop.f32.mrb[0].mxu0
    %3540 = vdwg.mxu0
    %v3541 = vmul.f32 %v3538, 0.5
    %vm3542 = vcmask 123904
    %3543 = vst.msk [vmem:[#allocation10] sm:$0x3] %vm3542, %v3541
    // Predicated region
    $region34: #{tpu_custom_call.1} parent=1 // pred_check
      _
    $region35: #{tpu_custom_call.1} parent=1 // pred_check_branch
      %3545 = sbr.rel (0) target = $region37
    $region36: #{tpu_custom_call.1} parent=1 // pred_region
      %s3547 = ssub.s32 32, 32
      %3548 = vsyncadd [#allocation4], %s3547
      %s3550 = sshll.u32 [#allocation10], 4
      %s3551 = int_to_ptr.vmem [resolvable:$true] %s3550
      %3553 = dma.vmem_to_hbm [thread:$0]  %s3551, 32, %s4, [#allocation4]
    $region37: #{tpu_custom_call.1} parent=1 // pred_fallthru
      _
    // Predicated region
    $region38: #{tpu_custom_call.1} parent=1 // pred_check
      _
    $region39: #{tpu_custom_call.1} parent=1 // pred_check_branch
      %3555 = sbr.rel (0) target = $region41
    $region40: #{tpu_custom_call.1} parent=1 // pred_region
      %3556 = dma.done [#allocation4], 32
    $region41: #{tpu_custom_call.1} parent=1 // pred_fallthru
      _
    %3557 = vsyncpa [#allocation3], 1
    %3558 = vsyncpa [#allocation6], 1
    %3559 = vsyncpa [#allocation9], 1
    %3560 = vsyncpa [#allocation4], 1

</llo_original>
